<compile_context>
chip_gen: v5e
topology: v5e:2x2
jax: 0.10.0
libtpu: 0.0.40
codegen_flags: <defaults>
</compile_context>

<pallas_src>
import jax
import jax.numpy as jnp
from jax.experimental import pallas as pl
from jax.experimental.pallas import tpu as pltpu

_LANE = 128          # lane width (last dim)
_SUBLANE_BF16 = 16   # bf16 sublane packing -> pad channel dims to multiples of 16


def _round_up(n, m):
    return ((n + m - 1) // m) * m


def _pick_group(batch, lp, target_lanes=512):
    """Batch elements fused per grid step so the matmul N-dim fills the MXU."""
    for g in (8, 4, 2):
        if batch % g == 0 and g * lp <= target_lanes:
            return g
    return 1


# ----------------------------------------------------------------------------
# Kernel
# ----------------------------------------------------------------------------
def _make_tcn_kernel(layer_meta, kernel_size, group, lp):
    """layer_meta: static tuple of (dilation, has_downsample, cout_p) per layer."""
    K = kernel_size

    def kernel(x_ref, b_ref, *refs):
        out_ref = refs[-1]
        wrefs = refs[:-1]

        # Hoisted lane-position iota, reused by every tap of every layer.
        lane = jax.lax.broadcasted_iota(jnp.int32, (1, lp), 1)

        biases = b_ref[...]                                # (Cmax, n_bias) f32

        # Wide activation layout: per-batch time segments side by side on lanes.
        parts = [x_ref[g] for g in range(group)]           # each (Cin_p, LP) f32
        a = parts[0] if group == 1 else jnp.concatenate(parts, axis=-1)

        def causal_shift(seg, left_col, s):
            # y[:, t] = seg[:, max(t - s, 0)]  (replicate left fill).
            if s == 0:
                return seg
            rolled = pltpu.roll(seg, shift=s, axis=1)      # XLU lane rotate
            return jnp.where(lane < s, left_col, rolled)   # VPU select fill

        def causal_slab(act, dil):
            # act: (C, G*LP) f32 -> tap-major (K*C, G*LP) bf16 slab for the MXU.
            taps = []
            for j in range(K):
                s = (K - 1 - j) * dil
                segs = [causal_shift(act[:, g * lp:(g + 1) * lp],
                                     act[:, g * lp:g * lp + 1], s)
                        for g in range(group)]
                taps.append(segs[0] if group == 1
                            else jnp.concatenate(segs, axis=-1))
            slab = taps[0] if K == 1 else jnp.concatenate(taps, axis=0)
            return slab.astype(jnp.bfloat16)

        r = 0
        col = 0
        for dil, has_ds, cout_p in layer_meta:             # statically unrolled
            w1 = wrefs[r][...]
            w2 = wrefs[r + 1][...]
            r += 2
            if has_ds:
                wd = wrefs[r][...]
                r += 1
            b1 = biases[:cout_p, col:col + 1]
            b2 = biases[:cout_p, col + 1:col + 2]
            col += 2
            if has_ds:
                bd = biases[:cout_p, col:col + 1]
                col += 1

            # conv1 (+ bias + ReLU); dropout1 is identity at inference.
            h = jnp.dot(w1, causal_slab(a, dil),
                        preferred_element_type=jnp.float32)
            h = jnp.maximum(h + b1, 0.0)

            # conv2 (+ bias + ReLU); dropout2 is identity at inference.
            y = jnp.dot(w2, causal_slab(h, dil),
                        preferred_element_type=jnp.float32)
            y = jnp.maximum(y + b2, 0.0)

            # residual (identity or 1x1 downsample conv) + block ReLU.
            if has_ds:
                res = jnp.dot(wd, a.astype(jnp.bfloat16),
                              preferred_element_type=jnp.float32) + bd
            else:
                res = a
            a = jnp.maximum(y + res, 0.0)                  # (cout_p, G*LP) f32

        for g in range(group):
            out_ref[g] = a[:, g * lp:(g + 1) * lp]

    return kernel


# ----------------------------------------------------------------------------
# Wrapper: parameter layout prep + single fused pallas_call
# ----------------------------------------------------------------------------
def _stack_weight(w_oik, cout_p, cin_p):
    """(O, I, K) conv weight -> zero-padded (cout_p, K*cin_p) bf16, tap-major."""
    O, I, K = w_oik.shape
    w = jnp.pad(w_oik, ((0, cout_p - O), (0, cin_p - I), (0, 0)))
    return jnp.transpose(w, (0, 2, 1)).reshape(cout_p, K * cin_p).astype(jnp.bfloat16)


def temporal_conv_net_pallas(x, params, kernel_size=2):
    """x: (B, Cin, L) float32 -> (B, num_channels[-1], L) float32."""
    B, c_in, L = x.shape
    K = kernel_size
    LP = _round_up(L, _LANE)                               # lane-dense time

    c_outs = [int(p["w1_oik"].shape[0]) for p in params]
    c_ins = [c_in] + c_outs[:-1]
    cp_ins = [_round_up(c, _SUBLANE_BF16) for c in c_ins]
    cp_outs = [_round_up(c, _SUBLANE_BF16) for c in c_outs]
    for l in range(1, len(params)):                        # chain padded widths
        cp_ins[l] = cp_outs[l - 1]
    cmax = max(cp_outs)

    G = _pick_group(B, LP)                                 # batches per grid step
    nb = B // G

    # Zero-pad channels (sublanes) and time (lanes). Padding is inert: causal
    # convs never read right of t, padded weight rows/cols and biases are zero.
    x_p = jnp.pad(x.astype(jnp.float32),
                  ((0, 0), (0, cp_ins[0] - c_in), (0, LP - L)))

    bias_cols = []
    wargs, wspecs = [], []
    layer_meta = []
    for l, p in enumerate(params):
        dil = 2 ** l
        has_ds = "wd_oik" in p
        cin_p, cout_p = cp_ins[l], cp_outs[l]

        wargs += [_stack_weight(p["w1_oik"], cout_p, cin_p),
                  _stack_weight(p["w2_oik"], cout_p, cout_p)]
        # Constant index maps -> each weight block DMAs once, stays in VMEM.
        wspecs += [pl.BlockSpec((cout_p, K * cin_p), lambda b: (0, 0)),
                   pl.BlockSpec((cout_p, K * cout_p), lambda b: (0, 0))]
        bias_cols += [jnp.pad(p["b1"], (0, cmax - c_outs[l])),
                      jnp.pad(p["b2"], (0, cmax - c_outs[l]))]
        if has_ds:
            wd = jnp.pad(p["wd_oik"][:, :, 0],
                         ((0, cout_p - c_outs[l]), (0, cin_p - c_ins[l])))
            wargs.append(wd.astype(jnp.bfloat16))
            wspecs.append(pl.BlockSpec((cout_p, cin_p), lambda b: (0, 0)))
            bias_cols.append(jnp.pad(p["bd"], (0, cmax - c_outs[l])))
        layer_meta.append((dil, has_ds, cout_p))

    # All biases packed into one f32 operand: columns = conv1, conv2[, ds] per layer.
    b_all = jnp.stack(bias_cols, axis=1).astype(jnp.float32)   # (cmax, n_bias)

    args = [x_p, b_all] + wargs
    in_specs = ([pl.BlockSpec((G, cp_ins[0], LP), lambda b: (b, 0, 0)),
                 pl.BlockSpec(b_all.shape, lambda b: (0, 0))]
                + wspecs)

    kernel = _make_tcn_kernel(tuple(layer_meta), K, G, LP)
    cout_p_last = cp_outs[-1]

    out_p = pl.pallas_call(
        kernel,
        out_shape=jax.ShapeDtypeStruct((B, cout_p_last, LP), jnp.float32),
        grid_spec=pltpu.PrefetchScalarGridSpec(
            num_scalar_prefetch=0,
            grid=(nb,),                                     # groups of G batches
            in_specs=in_specs,
            out_specs=pl.BlockSpec((G, cout_p_last, LP), lambda b: (b, 0, 0)),
        ),
        compiler_params=pltpu.CompilerParams(
            dimension_semantics=("parallel",),              # independent batches
            vmem_limit_bytes=32 * 1024 * 1024,              # v5e default is 16 MiB
        ),
    )(*args)

    return out_p[:, :c_outs[-1], :L]


# ----------------------------------------------------------------------------
# Deterministic parameter init (synthetic; mimics weight_norm reparam W = g*v/||v||)
# ----------------------------------------------------------------------------
def init_params(key, num_inputs, num_channels, kernel_size):
    params = []
    cin = num_inputs
    for cout in num_channels:
        key, k0, k1, k2, k3, k4, k5, k6, k7 = jax.random.split(key, 9)

        def weight_norm_init(kv, kg, shape):
            v = 0.01 * jax.random.normal(kv, shape, jnp.float32)
            norm = jnp.sqrt(jnp.sum(v * v, axis=(1, 2), keepdims=True)) + 1e-8
            g = 0.5 + jnp.abs(jax.random.normal(kg, (shape[0], 1, 1), jnp.float32))
            return g * v / norm                      # effective conv weight (O, I, K)

        w1 = weight_norm_init(k0, k1, (cout, cin, kernel_size))
        b1 = 0.1 * jax.random.normal(k2, (cout,), jnp.float32)
        w2 = weight_norm_init(k3, k4, (cout, cout, kernel_size))
        b2 = 0.1 * jax.random.normal(k5, (cout,), jnp.float32)

        p = dict(w1_oik=w1, b1=b1, w2_oik=w2, b2=b2)
        if cin != cout:  # 1x1 downsample conv (plain Conv1d, no weight_norm)
            p["wd_oik"] = 0.01 * jax.random.normal(k6, (cout, cin, 1), jnp.float32)
            p["bd"] = 0.1 * jax.random.normal(k7, (cout,), jnp.float32)
        params.append(p)
        cin = cout
    return params


# ----------------------------------------------------------------------------
# Pure-JAX reference (independent: lax.conv_general_dilated + replicate pad + chomp)
# ----------------------------------------------------------------------------
def _ref_block(x, p, dilation, kernel_size):
    pad = (kernel_size - 1) * dilation

    def conv(inp, w, b):
        xp = jnp.pad(inp, ((0, 0), (0, 0), (pad, pad)), mode="edge")
        y = jax.lax.conv_general_dilated(
            xp, w, window_strides=(1,), padding="VALID",
            rhs_dilation=(dilation,), dimension_numbers=("NCH", "OIH", "NCH"))
        y = y + b[None, :, None]
        return y[:, :, :-pad]  # Chomp1d

    h = jax.nn.relu(conv(x, p["w1_oik"], p["b1"]))
    g = jax.nn.relu(conv(h, p["w2_oik"], p["b2"]))
    if "wd_oik" in p:
        res = jax.lax.conv_general_dilated(
            x, p["wd_oik"], window_strides=(1,), padding="VALID",
            dimension_numbers=("NCH", "OIH", "NCH")) + p["bd"][None, :, None]
    else:
        res = x
    return jax.nn.relu(g + res)


def temporal_conv_net_ref(x, params, kernel_size=2):
    out = x
    for i, p in enumerate(params):
        out = _ref_block(out, p, 2 ** i, kernel_size)
    return out


# ----------------------------------------------------------------------------
if __name__ == "__main__":
    key = jax.random.PRNGKey(0)
    kx, kp = jax.random.split(key)

    B, num_inputs, L = 2, 4, 16
    num_channels = [25, 25, 25, 25]          # module default
    kernel_size = 2

    x = jax.random.normal(kx, (B, num_inputs, L), jnp.float32)
    params = init_params(kp, num_inputs, num_channels, kernel_size)

    tcn = jax.jit(lambda xx, pp: temporal_conv_net_pallas(xx, pp,
                                                          kernel_size=kernel_size))
    out = jax.block_until_ready(tcn(x, params))

    assert out.shape == (B, num_channels[-1], L), out.shape

    ref = temporal_conv_net_ref(x, params, kernel_size=kernel_size)
    # bf16 matmul operands with f32 accumulation -> loosened tolerance.
    if not jnp.allclose(out, ref, atol=5e-2, rtol=5e-2):
        max_err = jnp.max(jnp.abs(out - ref))
        raise AssertionError(f"Pallas TCN mismatch vs reference, max_err={max_err}")

    print("KERNEL_OK")
</pallas_src>

<mosaic_0001>
module attributes {stable_mosaic.version = 11 : i64} {
  func.func @kernel(%arg0: i32, %arg1: memref<2x16x128xf32, #tpu.memory_space<vmem>>, %arg2: memref<32x9xf32, #tpu.memory_space<vmem>>, %arg3: memref<32x32xbf16, #tpu.memory_space<vmem>>, %arg4: memref<32x64xbf16, #tpu.memory_space<vmem>>, %arg5: memref<32x16xbf16, #tpu.memory_space<vmem>>, %arg6: memref<32x64xbf16, #tpu.memory_space<vmem>>, %arg7: memref<32x64xbf16, #tpu.memory_space<vmem>>, %arg8: memref<32x64xbf16, #tpu.memory_space<vmem>>, %arg9: memref<32x64xbf16, #tpu.memory_space<vmem>>, %arg10: memref<32x64xbf16, #tpu.memory_space<vmem>>, %arg11: memref<32x64xbf16, #tpu.memory_space<vmem>>, %arg12: memref<2x32x128xf32, #tpu.memory_space<vmem>>) attributes {dimension_semantics = [#tpu.dimension_semantics<parallel>], iteration_bounds = array<i64: 1>, scalar_prefetch = 0 : i64, scratch_operands = 0 : i64, tpu.core_type = #tpu.core_type<tc>, window_params = [{transform_indices = @transform_0, window_bounds = array<i64: 2, 16, 128>}, {pipeline_mode = #tpu.pipeline_mode<synchronous>, transform_indices = @transform_1, window_bounds = array<i64: 32, 9>}, {pipeline_mode = #tpu.pipeline_mode<synchronous>, transform_indices = @transform_2, window_bounds = array<i64: 32, 32>}, {pipeline_mode = #tpu.pipeline_mode<synchronous>, transform_indices = @transform_3, window_bounds = array<i64: 32, 64>}, {pipeline_mode = #tpu.pipeline_mode<synchronous>, transform_indices = @transform_4, window_bounds = array<i64: 32, 16>}, {pipeline_mode = #tpu.pipeline_mode<synchronous>, transform_indices = @transform_5, window_bounds = array<i64: 32, 64>}, {pipeline_mode = #tpu.pipeline_mode<synchronous>, transform_indices = @transform_6, window_bounds = array<i64: 32, 64>}, {pipeline_mode = #tpu.pipeline_mode<synchronous>, transform_indices = @transform_7, window_bounds = array<i64: 32, 64>}, {pipeline_mode = #tpu.pipeline_mode<synchronous>, transform_indices = @transform_8, window_bounds = array<i64: 32, 64>}, {pipeline_mode = #tpu.pipeline_mode<synchronous>, transform_indices = @transform_9, window_bounds = array<i64: 32, 64>}, {pipeline_mode = #tpu.pipeline_mode<synchronous>, transform_indices = @transform_10, window_bounds = array<i64: 32, 64>}, {transform_indices = @transform_11, window_bounds = array<i64: 2, 32, 128>}]} {
    %0 = tpu.iota {dimensions = array<i32: 1>} : vector<1x128xi32>
    %c0 = arith.constant 0 : index
    %c0_0 = arith.constant 0 : index
    %1 = vector.load %arg2[%c0, %c0_0] : memref<32x9xf32, #tpu.memory_space<vmem>>, vector<32x9xf32>
    %c0_1 = arith.constant 0 : index
    %c0_2 = arith.constant 0 : index
    %c0_3 = arith.constant 0 : index
    %2 = vector.load %arg1[%c0_1, %c0_2, %c0_3] : memref<2x16x128xf32, #tpu.memory_space<vmem>>, vector<1x16x128xf32>
    %3 = vector.shape_cast %2 : vector<1x16x128xf32> to vector<16x128xf32>
    %c1 = arith.constant 1 : index
    %c0_4 = arith.constant 0 : index
    %c0_5 = arith.constant 0 : index
    %4 = vector.load %arg1[%c1, %c0_4, %c0_5] : memref<2x16x128xf32, #tpu.memory_space<vmem>>, vector<1x16x128xf32>
    %5 = vector.shape_cast %4 : vector<1x16x128xf32> to vector<16x128xf32>
    %6 = tpu.concatenate %3, %5 in 1 : vector<16x128xf32>, vector<16x128xf32> -> vector<16x256xf32>
    %c0_6 = arith.constant 0 : index
    %c0_7 = arith.constant 0 : index
    %7 = vector.load %arg3[%c0_6, %c0_7] : memref<32x32xbf16, #tpu.memory_space<vmem>>, vector<32x32xbf16>
    %c0_8 = arith.constant 0 : index
    %c0_9 = arith.constant 0 : index
    %8 = vector.load %arg4[%c0_8, %c0_9] : memref<32x64xbf16, #tpu.memory_space<vmem>>, vector<32x64xbf16>
    %c0_10 = arith.constant 0 : index
    %c0_11 = arith.constant 0 : index
    %9 = vector.load %arg5[%c0_10, %c0_11] : memref<32x16xbf16, #tpu.memory_space<vmem>>, vector<32x16xbf16>
    %10 = vector.extract_strided_slice %1 {offsets = [0, 0], sizes = [32, 1], strides = [1, 1]} : vector<32x9xf32> to vector<32x1xf32>
    %11 = vector.extract_strided_slice %1 {offsets = [0, 1], sizes = [32, 1], strides = [1, 1]} : vector<32x9xf32> to vector<32x1xf32>
    %12 = vector.extract_strided_slice %1 {offsets = [0, 2], sizes = [32, 1], strides = [1, 1]} : vector<32x9xf32> to vector<32x1xf32>
    %13 = vector.extract_strided_slice %6 {offsets = [0, 0], sizes = [16, 128], strides = [1, 1]} : vector<16x256xf32> to vector<16x128xf32>
    %14 = vector.extract_strided_slice %6 {offsets = [0, 0], sizes = [16, 1], strides = [1, 1]} : vector<16x256xf32> to vector<16x1xf32>
    %c1_i32 = arith.constant 1 : i32
    %15 = tpu.dynamic_rotate %13 by %c1_i32 dim 1 : vector<16x128xf32>, i32 -> vector<16x128xf32>
    %c1_i32_12 = arith.constant 1 : i32
    %16 = vector.broadcast %c1_i32_12 : i32 to vector<1x128xi32>
    %17 = arith.cmpi slt, %0, %16 : vector<1x128xi32>
    %18 = vector.shape_cast %17 : vector<1x128xi1> to vector<1x128xi1>
    %19 = vector.broadcast %18 : vector<1x128xi1> to vector<16x128xi1>
    %20 = vector.shape_cast %14 : vector<16x1xf32> to vector<16x1xf32>
    %21 = vector.broadcast %20 : vector<16x1xf32> to vector<16x128xf32>
    %22 = arith.select %19, %21, %15 : vector<16x128xi1>, vector<16x128xf32>
    %23 = vector.extract_strided_slice %6 {offsets = [0, 128], sizes = [16, 128], strides = [1, 1]} : vector<16x256xf32> to vector<16x128xf32>
    %24 = vector.extract_strided_slice %6 {offsets = [0, 128], sizes = [16, 1], strides = [1, 1]} : vector<16x256xf32> to vector<16x1xf32>
    %c1_i32_13 = arith.constant 1 : i32
    %25 = tpu.dynamic_rotate %23 by %c1_i32_13 dim 1 : vector<16x128xf32>, i32 -> vector<16x128xf32>
    %c1_i32_14 = arith.constant 1 : i32
    %26 = vector.broadcast %c1_i32_14 : i32 to vector<1x128xi32>
    %27 = arith.cmpi slt, %0, %26 : vector<1x128xi32>
    %28 = vector.shape_cast %27 : vector<1x128xi1> to vector<1x128xi1>
    %29 = vector.broadcast %28 : vector<1x128xi1> to vector<16x128xi1>
    %30 = vector.shape_cast %24 : vector<16x1xf32> to vector<16x1xf32>
    %31 = vector.broadcast %30 : vector<16x1xf32> to vector<16x128xf32>
    %32 = arith.select %29, %31, %25 : vector<16x128xi1>, vector<16x128xf32>
    %33 = tpu.concatenate %22, %32 in 1 : vector<16x128xf32>, vector<16x128xf32> -> vector<16x256xf32>
    %34 = vector.extract_strided_slice %6 {offsets = [0, 0], sizes = [16, 128], strides = [1, 1]} : vector<16x256xf32> to vector<16x128xf32>
    %35 = vector.extract_strided_slice %6 {offsets = [0, 128], sizes = [16, 128], strides = [1, 1]} : vector<16x256xf32> to vector<16x128xf32>
    %36 = tpu.concatenate %34, %35 in 1 : vector<16x128xf32>, vector<16x128xf32> -> vector<16x256xf32>
    %37 = tpu.concatenate %33, %36 in 0 : vector<16x256xf32>, vector<16x256xf32> -> vector<32x256xf32>
    %38 = arith.truncf %37 : vector<32x256xf32> to vector<32x256xbf16>
    %cst = arith.constant dense<0.000000e+00> : vector<32x256xf32>
    %39 = tpu.matmul %7, %38, %cst {dimension_numbers = #tpu.dot_dimension_numbers<[1], [0], [0], [1], [0, 0, 1, 1], [], []>} : vector<32x32xbf16>, vector<32x256xbf16>, vector<32x256xf32> -> vector<32x256xf32>
    %40 = vector.broadcast %10 : vector<32x1xf32> to vector<32x256xf32>
    %41 = arith.addf %39, %40 : vector<32x256xf32>
    %cst_15 = arith.constant 0.000000e+00 : f32
    %42 = vector.broadcast %cst_15 : f32 to vector<32x256xf32>
    %43 = arith.maximumf %41, %42 : vector<32x256xf32>
    %44 = vector.extract_strided_slice %43 {offsets = [0, 0], sizes = [32, 128], strides = [1, 1]} : vector<32x256xf32> to vector<32x128xf32>
    %45 = vector.extract_strided_slice %43 {offsets = [0, 0], sizes = [32, 1], strides = [1, 1]} : vector<32x256xf32> to vector<32x1xf32>
    %c1_i32_16 = arith.constant 1 : i32
    %46 = tpu.dynamic_rotate %44 by %c1_i32_16 dim 1 : vector<32x128xf32>, i32 -> vector<32x128xf32>
    %c1_i32_17 = arith.constant 1 : i32
    %47 = vector.broadcast %c1_i32_17 : i32 to vector<1x128xi32>
    %48 = arith.cmpi slt, %0, %47 : vector<1x128xi32>
    %49 = vector.shape_cast %48 : vector<1x128xi1> to vector<1x128xi1>
    %50 = vector.broadcast %49 : vector<1x128xi1> to vector<32x128xi1>
    %51 = vector.shape_cast %45 : vector<32x1xf32> to vector<32x1xf32>
    %52 = vector.broadcast %51 : vector<32x1xf32> to vector<32x128xf32>
    %53 = arith.select %50, %52, %46 : vector<32x128xi1>, vector<32x128xf32>
    %54 = vector.extract_strided_slice %43 {offsets = [0, 128], sizes = [32, 128], strides = [1, 1]} : vector<32x256xf32> to vector<32x128xf32>
    %55 = vector.extract_strided_slice %43 {offsets = [0, 128], sizes = [32, 1], strides = [1, 1]} : vector<32x256xf32> to vector<32x1xf32>
    %c1_i32_18 = arith.constant 1 : i32
    %56 = tpu.dynamic_rotate %54 by %c1_i32_18 dim 1 : vector<32x128xf32>, i32 -> vector<32x128xf32>
    %c1_i32_19 = arith.constant 1 : i32
    %57 = vector.broadcast %c1_i32_19 : i32 to vector<1x128xi32>
    %58 = arith.cmpi slt, %0, %57 : vector<1x128xi32>
    %59 = vector.shape_cast %58 : vector<1x128xi1> to vector<1x128xi1>
    %60 = vector.broadcast %59 : vector<1x128xi1> to vector<32x128xi1>
    %61 = vector.shape_cast %55 : vector<32x1xf32> to vector<32x1xf32>
    %62 = vector.broadcast %61 : vector<32x1xf32> to vector<32x128xf32>
    %63 = arith.select %60, %62, %56 : vector<32x128xi1>, vector<32x128xf32>
    %64 = tpu.concatenate %53, %63 in 1 : vector<32x128xf32>, vector<32x128xf32> -> vector<32x256xf32>
    %65 = vector.extract_strided_slice %43 {offsets = [0, 0], sizes = [32, 128], strides = [1, 1]} : vector<32x256xf32> to vector<32x128xf32>
    %66 = vector.extract_strided_slice %43 {offsets = [0, 128], sizes = [32, 128], strides = [1, 1]} : vector<32x256xf32> to vector<32x128xf32>
    %67 = tpu.concatenate %65, %66 in 1 : vector<32x128xf32>, vector<32x128xf32> -> vector<32x256xf32>
    %68 = tpu.concatenate %64, %67 in 0 : vector<32x256xf32>, vector<32x256xf32> -> vector<64x256xf32>
    %69 = arith.truncf %68 : vector<64x256xf32> to vector<64x256xbf16>
    %cst_20 = arith.constant dense<0.000000e+00> : vector<32x256xf32>
    %70 = tpu.matmul %8, %69, %cst_20 {dimension_numbers = #tpu.dot_dimension_numbers<[1], [0], [0], [1], [0, 0, 1, 1], [], []>} : vector<32x64xbf16>, vector<64x256xbf16>, vector<32x256xf32> -> vector<32x256xf32>
    %71 = vector.broadcast %11 : vector<32x1xf32> to vector<32x256xf32>
    %72 = arith.addf %70, %71 : vector<32x256xf32>
    %cst_21 = arith.constant 0.000000e+00 : f32
    %73 = vector.broadcast %cst_21 : f32 to vector<32x256xf32>
    %74 = arith.maximumf %72, %73 : vector<32x256xf32>
    %75 = arith.truncf %6 : vector<16x256xf32> to vector<16x256xbf16>
    %cst_22 = arith.constant dense<0.000000e+00> : vector<32x256xf32>
    %76 = tpu.matmul %9, %75, %cst_22 {dimension_numbers = #tpu.dot_dimension_numbers<[1], [0], [0], [1], [0, 0, 1, 1], [], []>} : vector<32x16xbf16>, vector<16x256xbf16>, vector<32x256xf32> -> vector<32x256xf32>
    %77 = vector.broadcast %12 : vector<32x1xf32> to vector<32x256xf32>
    %78 = arith.addf %76, %77 : vector<32x256xf32>
    %79 = arith.addf %74, %78 : vector<32x256xf32>
    %cst_23 = arith.constant 0.000000e+00 : f32
    %80 = vector.broadcast %cst_23 : f32 to vector<32x256xf32>
    %81 = arith.maximumf %79, %80 : vector<32x256xf32>
    %c0_24 = arith.constant 0 : index
    %c0_25 = arith.constant 0 : index
    %82 = vector.load %arg6[%c0_24, %c0_25] : memref<32x64xbf16, #tpu.memory_space<vmem>>, vector<32x64xbf16>
    %c0_26 = arith.constant 0 : index
    %c0_27 = arith.constant 0 : index
    %83 = vector.load %arg7[%c0_26, %c0_27] : memref<32x64xbf16, #tpu.memory_space<vmem>>, vector<32x64xbf16>
    %84 = vector.extract_strided_slice %1 {offsets = [0, 3], sizes = [32, 1], strides = [1, 1]} : vector<32x9xf32> to vector<32x1xf32>
    %85 = vector.extract_strided_slice %1 {offsets = [0, 4], sizes = [32, 1], strides = [1, 1]} : vector<32x9xf32> to vector<32x1xf32>
    %86 = vector.extract_strided_slice %81 {offsets = [0, 0], sizes = [32, 128], strides = [1, 1]} : vector<32x256xf32> to vector<32x128xf32>
    %87 = vector.extract_strided_slice %81 {offsets = [0, 0], sizes = [32, 1], strides = [1, 1]} : vector<32x256xf32> to vector<32x1xf32>
    %c2_i32 = arith.constant 2 : i32
    %88 = tpu.dynamic_rotate %86 by %c2_i32 dim 1 : vector<32x128xf32>, i32 -> vector<32x128xf32>
    %c2_i32_28 = arith.constant 2 : i32
    %89 = vector.broadcast %c2_i32_28 : i32 to vector<1x128xi32>
    %90 = arith.cmpi slt, %0, %89 : vector<1x128xi32>
    %91 = vector.shape_cast %90 : vector<1x128xi1> to vector<1x128xi1>
    %92 = vector.broadcast %91 : vector<1x128xi1> to vector<32x128xi1>
    %93 = vector.shape_cast %87 : vector<32x1xf32> to vector<32x1xf32>
    %94 = vector.broadcast %93 : vector<32x1xf32> to vector<32x128xf32>
    %95 = arith.select %92, %94, %88 : vector<32x128xi1>, vector<32x128xf32>
    %96 = vector.extract_strided_slice %81 {offsets = [0, 128], sizes = [32, 128], strides = [1, 1]} : vector<32x256xf32> to vector<32x128xf32>
    %97 = vector.extract_strided_slice %81 {offsets = [0, 128], sizes = [32, 1], strides = [1, 1]} : vector<32x256xf32> to vector<32x1xf32>
    %c2_i32_29 = arith.constant 2 : i32
    %98 = tpu.dynamic_rotate %96 by %c2_i32_29 dim 1 : vector<32x128xf32>, i32 -> vector<32x128xf32>
    %c2_i32_30 = arith.constant 2 : i32
    %99 = vector.broadcast %c2_i32_30 : i32 to vector<1x128xi32>
    %100 = arith.cmpi slt, %0, %99 : vector<1x128xi32>
    %101 = vector.shape_cast %100 : vector<1x128xi1> to vector<1x128xi1>
    %102 = vector.broadcast %101 : vector<1x128xi1> to vector<32x128xi1>
    %103 = vector.shape_cast %97 : vector<32x1xf32> to vector<32x1xf32>
    %104 = vector.broadcast %103 : vector<32x1xf32> to vector<32x128xf32>
    %105 = arith.select %102, %104, %98 : vector<32x128xi1>, vector<32x128xf32>
    %106 = tpu.concatenate %95, %105 in 1 : vector<32x128xf32>, vector<32x128xf32> -> vector<32x256xf32>
    %107 = vector.extract_strided_slice %81 {offsets = [0, 0], sizes = [32, 128], strides = [1, 1]} : vector<32x256xf32> to vector<32x128xf32>
    %108 = vector.extract_strided_slice %81 {offsets = [0, 128], sizes = [32, 128], strides = [1, 1]} : vector<32x256xf32> to vector<32x128xf32>
    %109 = tpu.concatenate %107, %108 in 1 : vector<32x128xf32>, vector<32x128xf32> -> vector<32x256xf32>
    %110 = tpu.concatenate %106, %109 in 0 : vector<32x256xf32>, vector<32x256xf32> -> vector<64x256xf32>
    %111 = arith.truncf %110 : vector<64x256xf32> to vector<64x256xbf16>
    %cst_31 = arith.constant dense<0.000000e+00> : vector<32x256xf32>
    %112 = tpu.matmul %82, %111, %cst_31 {dimension_numbers = #tpu.dot_dimension_numbers<[1], [0], [0], [1], [0, 0, 1, 1], [], []>} : vector<32x64xbf16>, vector<64x256xbf16>, vector<32x256xf32> -> vector<32x256xf32>
    %113 = vector.broadcast %84 : vector<32x1xf32> to vector<32x256xf32>
    %114 = arith.addf %112, %113 : vector<32x256xf32>
    %cst_32 = arith.constant 0.000000e+00 : f32
    %115 = vector.broadcast %cst_32 : f32 to vector<32x256xf32>
    %116 = arith.maximumf %114, %115 : vector<32x256xf32>
    %117 = vector.extract_strided_slice %116 {offsets = [0, 0], sizes = [32, 128], strides = [1, 1]} : vector<32x256xf32> to vector<32x128xf32>
    %118 = vector.extract_strided_slice %116 {offsets = [0, 0], sizes = [32, 1], strides = [1, 1]} : vector<32x256xf32> to vector<32x1xf32>
    %c2_i32_33 = arith.constant 2 : i32
    %119 = tpu.dynamic_rotate %117 by %c2_i32_33 dim 1 : vector<32x128xf32>, i32 -> vector<32x128xf32>
    %c2_i32_34 = arith.constant 2 : i32
    %120 = vector.broadcast %c2_i32_34 : i32 to vector<1x128xi32>
    %121 = arith.cmpi slt, %0, %120 : vector<1x128xi32>
    %122 = vector.shape_cast %121 : vector<1x128xi1> to vector<1x128xi1>
    %123 = vector.broadcast %122 : vector<1x128xi1> to vector<32x128xi1>
    %124 = vector.shape_cast %118 : vector<32x1xf32> to vector<32x1xf32>
    %125 = vector.broadcast %124 : vector<32x1xf32> to vector<32x128xf32>
    %126 = arith.select %123, %125, %119 : vector<32x128xi1>, vector<32x128xf32>
    %127 = vector.extract_strided_slice %116 {offsets = [0, 128], sizes = [32, 128], strides = [1, 1]} : vector<32x256xf32> to vector<32x128xf32>
    %128 = vector.extract_strided_slice %116 {offsets = [0, 128], sizes = [32, 1], strides = [1, 1]} : vector<32x256xf32> to vector<32x1xf32>
    %c2_i32_35 = arith.constant 2 : i32
    %129 = tpu.dynamic_rotate %127 by %c2_i32_35 dim 1 : vector<32x128xf32>, i32 -> vector<32x128xf32>
    %c2_i32_36 = arith.constant 2 : i32
    %130 = vector.broadcast %c2_i32_36 : i32 to vector<1x128xi32>
    %131 = arith.cmpi slt, %0, %130 : vector<1x128xi32>
    %132 = vector.shape_cast %131 : vector<1x128xi1> to vector<1x128xi1>
    %133 = vector.broadcast %132 : vector<1x128xi1> to vector<32x128xi1>
    %134 = vector.shape_cast %128 : vector<32x1xf32> to vector<32x1xf32>
    %135 = vector.broadcast %134 : vector<32x1xf32> to vector<32x128xf32>
    %136 = arith.select %133, %135, %129 : vector<32x128xi1>, vector<32x128xf32>
    %137 = tpu.concatenate %126, %136 in 1 : vector<32x128xf32>, vector<32x128xf32> -> vector<32x256xf32>
    %138 = vector.extract_strided_slice %116 {offsets = [0, 0], sizes = [32, 128], strides = [1, 1]} : vector<32x256xf32> to vector<32x128xf32>
    %139 = vector.extract_strided_slice %116 {offsets = [0, 128], sizes = [32, 128], strides = [1, 1]} : vector<32x256xf32> to vector<32x128xf32>
    %140 = tpu.concatenate %138, %139 in 1 : vector<32x128xf32>, vector<32x128xf32> -> vector<32x256xf32>
    %141 = tpu.concatenate %137, %140 in 0 : vector<32x256xf32>, vector<32x256xf32> -> vector<64x256xf32>
    %142 = arith.truncf %141 : vector<64x256xf32> to vector<64x256xbf16>
    %cst_37 = arith.constant dense<0.000000e+00> : vector<32x256xf32>
    %143 = tpu.matmul %83, %142, %cst_37 {dimension_numbers = #tpu.dot_dimension_numbers<[1], [0], [0], [1], [0, 0, 1, 1], [], []>} : vector<32x64xbf16>, vector<64x256xbf16>, vector<32x256xf32> -> vector<32x256xf32>
    %144 = vector.broadcast %85 : vector<32x1xf32> to vector<32x256xf32>
    %145 = arith.addf %143, %144 : vector<32x256xf32>
    %cst_38 = arith.constant 0.000000e+00 : f32
    %146 = vector.broadcast %cst_38 : f32 to vector<32x256xf32>
    %147 = arith.maximumf %145, %146 : vector<32x256xf32>
    %148 = arith.addf %147, %81 : vector<32x256xf32>
    %cst_39 = arith.constant 0.000000e+00 : f32
    %149 = vector.broadcast %cst_39 : f32 to vector<32x256xf32>
    %150 = arith.maximumf %148, %149 : vector<32x256xf32>
    %c0_40 = arith.constant 0 : index
    %c0_41 = arith.constant 0 : index
    %151 = vector.load %arg8[%c0_40, %c0_41] : memref<32x64xbf16, #tpu.memory_space<vmem>>, vector<32x64xbf16>
    %c0_42 = arith.constant 0 : index
    %c0_43 = arith.constant 0 : index
    %152 = vector.load %arg9[%c0_42, %c0_43] : memref<32x64xbf16, #tpu.memory_space<vmem>>, vector<32x64xbf16>
    %153 = vector.extract_strided_slice %1 {offsets = [0, 5], sizes = [32, 1], strides = [1, 1]} : vector<32x9xf32> to vector<32x1xf32>
    %154 = vector.extract_strided_slice %1 {offsets = [0, 6], sizes = [32, 1], strides = [1, 1]} : vector<32x9xf32> to vector<32x1xf32>
    %155 = vector.extract_strided_slice %150 {offsets = [0, 0], sizes = [32, 128], strides = [1, 1]} : vector<32x256xf32> to vector<32x128xf32>
    %156 = vector.extract_strided_slice %150 {offsets = [0, 0], sizes = [32, 1], strides = [1, 1]} : vector<32x256xf32> to vector<32x1xf32>
    %c4_i32 = arith.constant 4 : i32
    %157 = tpu.dynamic_rotate %155 by %c4_i32 dim 1 : vector<32x128xf32>, i32 -> vector<32x128xf32>
    %c4_i32_44 = arith.constant 4 : i32
    %158 = vector.broadcast %c4_i32_44 : i32 to vector<1x128xi32>
    %159 = arith.cmpi slt, %0, %158 : vector<1x128xi32>
    %160 = vector.shape_cast %159 : vector<1x128xi1> to vector<1x128xi1>
    %161 = vector.broadcast %160 : vector<1x128xi1> to vector<32x128xi1>
    %162 = vector.shape_cast %156 : vector<32x1xf32> to vector<32x1xf32>
    %163 = vector.broadcast %162 : vector<32x1xf32> to vector<32x128xf32>
    %164 = arith.select %161, %163, %157 : vector<32x128xi1>, vector<32x128xf32>
    %165 = vector.extract_strided_slice %150 {offsets = [0, 128], sizes = [32, 128], strides = [1, 1]} : vector<32x256xf32> to vector<32x128xf32>
    %166 = vector.extract_strided_slice %150 {offsets = [0, 128], sizes = [32, 1], strides = [1, 1]} : vector<32x256xf32> to vector<32x1xf32>
    %c4_i32_45 = arith.constant 4 : i32
    %167 = tpu.dynamic_rotate %165 by %c4_i32_45 dim 1 : vector<32x128xf32>, i32 -> vector<32x128xf32>
    %c4_i32_46 = arith.constant 4 : i32
    %168 = vector.broadcast %c4_i32_46 : i32 to vector<1x128xi32>
    %169 = arith.cmpi slt, %0, %168 : vector<1x128xi32>
    %170 = vector.shape_cast %169 : vector<1x128xi1> to vector<1x128xi1>
    %171 = vector.broadcast %170 : vector<1x128xi1> to vector<32x128xi1>
    %172 = vector.shape_cast %166 : vector<32x1xf32> to vector<32x1xf32>
    %173 = vector.broadcast %172 : vector<32x1xf32> to vector<32x128xf32>
    %174 = arith.select %171, %173, %167 : vector<32x128xi1>, vector<32x128xf32>
    %175 = tpu.concatenate %164, %174 in 1 : vector<32x128xf32>, vector<32x128xf32> -> vector<32x256xf32>
    %176 = vector.extract_strided_slice %150 {offsets = [0, 0], sizes = [32, 128], strides = [1, 1]} : vector<32x256xf32> to vector<32x128xf32>
    %177 = vector.extract_strided_slice %150 {offsets = [0, 128], sizes = [32, 128], strides = [1, 1]} : vector<32x256xf32> to vector<32x128xf32>
    %178 = tpu.concatenate %176, %177 in 1 : vector<32x128xf32>, vector<32x128xf32> -> vector<32x256xf32>
    %179 = tpu.concatenate %175, %178 in 0 : vector<32x256xf32>, vector<32x256xf32> -> vector<64x256xf32>
    %180 = arith.truncf %179 : vector<64x256xf32> to vector<64x256xbf16>
    %cst_47 = arith.constant dense<0.000000e+00> : vector<32x256xf32>
    %181 = tpu.matmul %151, %180, %cst_47 {dimension_numbers = #tpu.dot_dimension_numbers<[1], [0], [0], [1], [0, 0, 1, 1], [], []>} : vector<32x64xbf16>, vector<64x256xbf16>, vector<32x256xf32> -> vector<32x256xf32>
    %182 = vector.broadcast %153 : vector<32x1xf32> to vector<32x256xf32>
    %183 = arith.addf %181, %182 : vector<32x256xf32>
    %cst_48 = arith.constant 0.000000e+00 : f32
    %184 = vector.broadcast %cst_48 : f32 to vector<32x256xf32>
    %185 = arith.maximumf %183, %184 : vector<32x256xf32>
    %186 = vector.extract_strided_slice %185 {offsets = [0, 0], sizes = [32, 128], strides = [1, 1]} : vector<32x256xf32> to vector<32x128xf32>
    %187 = vector.extract_strided_slice %185 {offsets = [0, 0], sizes = [32, 1], strides = [1, 1]} : vector<32x256xf32> to vector<32x1xf32>
    %c4_i32_49 = arith.constant 4 : i32
    %188 = tpu.dynamic_rotate %186 by %c4_i32_49 dim 1 : vector<32x128xf32>, i32 -> vector<32x128xf32>
    %c4_i32_50 = arith.constant 4 : i32
    %189 = vector.broadcast %c4_i32_50 : i32 to vector<1x128xi32>
    %190 = arith.cmpi slt, %0, %189 : vector<1x128xi32>
    %191 = vector.shape_cast %190 : vector<1x128xi1> to vector<1x128xi1>
    %192 = vector.broadcast %191 : vector<1x128xi1> to vector<32x128xi1>
    %193 = vector.shape_cast %187 : vector<32x1xf32> to vector<32x1xf32>
    %194 = vector.broadcast %193 : vector<32x1xf32> to vector<32x128xf32>
    %195 = arith.select %192, %194, %188 : vector<32x128xi1>, vector<32x128xf32>
    %196 = vector.extract_strided_slice %185 {offsets = [0, 128], sizes = [32, 128], strides = [1, 1]} : vector<32x256xf32> to vector<32x128xf32>
    %197 = vector.extract_strided_slice %185 {offsets = [0, 128], sizes = [32, 1], strides = [1, 1]} : vector<32x256xf32> to vector<32x1xf32>
    %c4_i32_51 = arith.constant 4 : i32
    %198 = tpu.dynamic_rotate %196 by %c4_i32_51 dim 1 : vector<32x128xf32>, i32 -> vector<32x128xf32>
    %c4_i32_52 = arith.constant 4 : i32
    %199 = vector.broadcast %c4_i32_52 : i32 to vector<1x128xi32>
    %200 = arith.cmpi slt, %0, %199 : vector<1x128xi32>
    %201 = vector.shape_cast %200 : vector<1x128xi1> to vector<1x128xi1>
    %202 = vector.broadcast %201 : vector<1x128xi1> to vector<32x128xi1>
    %203 = vector.shape_cast %197 : vector<32x1xf32> to vector<32x1xf32>
    %204 = vector.broadcast %203 : vector<32x1xf32> to vector<32x128xf32>
    %205 = arith.select %202, %204, %198 : vector<32x128xi1>, vector<32x128xf32>
    %206 = tpu.concatenate %195, %205 in 1 : vector<32x128xf32>, vector<32x128xf32> -> vector<32x256xf32>
    %207 = vector.extract_strided_slice %185 {offsets = [0, 0], sizes = [32, 128], strides = [1, 1]} : vector<32x256xf32> to vector<32x128xf32>
    %208 = vector.extract_strided_slice %185 {offsets = [0, 128], sizes = [32, 128], strides = [1, 1]} : vector<32x256xf32> to vector<32x128xf32>
    %209 = tpu.concatenate %207, %208 in 1 : vector<32x128xf32>, vector<32x128xf32> -> vector<32x256xf32>
    %210 = tpu.concatenate %206, %209 in 0 : vector<32x256xf32>, vector<32x256xf32> -> vector<64x256xf32>
    %211 = arith.truncf %210 : vector<64x256xf32> to vector<64x256xbf16>
    %cst_53 = arith.constant dense<0.000000e+00> : vector<32x256xf32>
    %212 = tpu.matmul %152, %211, %cst_53 {dimension_numbers = #tpu.dot_dimension_numbers<[1], [0], [0], [1], [0, 0, 1, 1], [], []>} : vector<32x64xbf16>, vector<64x256xbf16>, vector<32x256xf32> -> vector<32x256xf32>
    %213 = vector.broadcast %154 : vector<32x1xf32> to vector<32x256xf32>
    %214 = arith.addf %212, %213 : vector<32x256xf32>
    %cst_54 = arith.constant 0.000000e+00 : f32
    %215 = vector.broadcast %cst_54 : f32 to vector<32x256xf32>
    %216 = arith.maximumf %214, %215 : vector<32x256xf32>
    %217 = arith.addf %216, %150 : vector<32x256xf32>
    %cst_55 = arith.constant 0.000000e+00 : f32
    %218 = vector.broadcast %cst_55 : f32 to vector<32x256xf32>
    %219 = arith.maximumf %217, %218 : vector<32x256xf32>
    %c0_56 = arith.constant 0 : index
    %c0_57 = arith.constant 0 : index
    %220 = vector.load %arg10[%c0_56, %c0_57] : memref<32x64xbf16, #tpu.memory_space<vmem>>, vector<32x64xbf16>
    %c0_58 = arith.constant 0 : index
    %c0_59 = arith.constant 0 : index
    %221 = vector.load %arg11[%c0_58, %c0_59] : memref<32x64xbf16, #tpu.memory_space<vmem>>, vector<32x64xbf16>
    %222 = vector.extract_strided_slice %1 {offsets = [0, 7], sizes = [32, 1], strides = [1, 1]} : vector<32x9xf32> to vector<32x1xf32>
    %223 = vector.extract_strided_slice %1 {offsets = [0, 8], sizes = [32, 1], strides = [1, 1]} : vector<32x9xf32> to vector<32x1xf32>
    %224 = vector.extract_strided_slice %219 {offsets = [0, 0], sizes = [32, 128], strides = [1, 1]} : vector<32x256xf32> to vector<32x128xf32>
    %225 = vector.extract_strided_slice %219 {offsets = [0, 0], sizes = [32, 1], strides = [1, 1]} : vector<32x256xf32> to vector<32x1xf32>
    %c8_i32 = arith.constant 8 : i32
    %226 = tpu.dynamic_rotate %224 by %c8_i32 dim 1 : vector<32x128xf32>, i32 -> vector<32x128xf32>
    %c8_i32_60 = arith.constant 8 : i32
    %227 = vector.broadcast %c8_i32_60 : i32 to vector<1x128xi32>
    %228 = arith.cmpi slt, %0, %227 : vector<1x128xi32>
    %229 = vector.shape_cast %228 : vector<1x128xi1> to vector<1x128xi1>
    %230 = vector.broadcast %229 : vector<1x128xi1> to vector<32x128xi1>
    %231 = vector.shape_cast %225 : vector<32x1xf32> to vector<32x1xf32>
    %232 = vector.broadcast %231 : vector<32x1xf32> to vector<32x128xf32>
    %233 = arith.select %230, %232, %226 : vector<32x128xi1>, vector<32x128xf32>
    %234 = vector.extract_strided_slice %219 {offsets = [0, 128], sizes = [32, 128], strides = [1, 1]} : vector<32x256xf32> to vector<32x128xf32>
    %235 = vector.extract_strided_slice %219 {offsets = [0, 128], sizes = [32, 1], strides = [1, 1]} : vector<32x256xf32> to vector<32x1xf32>
    %c8_i32_61 = arith.constant 8 : i32
    %236 = tpu.dynamic_rotate %234 by %c8_i32_61 dim 1 : vector<32x128xf32>, i32 -> vector<32x128xf32>
    %c8_i32_62 = arith.constant 8 : i32
    %237 = vector.broadcast %c8_i32_62 : i32 to vector<1x128xi32>
    %238 = arith.cmpi slt, %0, %237 : vector<1x128xi32>
    %239 = vector.shape_cast %238 : vector<1x128xi1> to vector<1x128xi1>
    %240 = vector.broadcast %239 : vector<1x128xi1> to vector<32x128xi1>
    %241 = vector.shape_cast %235 : vector<32x1xf32> to vector<32x1xf32>
    %242 = vector.broadcast %241 : vector<32x1xf32> to vector<32x128xf32>
    %243 = arith.select %240, %242, %236 : vector<32x128xi1>, vector<32x128xf32>
    %244 = tpu.concatenate %233, %243 in 1 : vector<32x128xf32>, vector<32x128xf32> -> vector<32x256xf32>
    %245 = vector.extract_strided_slice %219 {offsets = [0, 0], sizes = [32, 128], strides = [1, 1]} : vector<32x256xf32> to vector<32x128xf32>
    %246 = vector.extract_strided_slice %219 {offsets = [0, 128], sizes = [32, 128], strides = [1, 1]} : vector<32x256xf32> to vector<32x128xf32>
    %247 = tpu.concatenate %245, %246 in 1 : vector<32x128xf32>, vector<32x128xf32> -> vector<32x256xf32>
    %248 = tpu.concatenate %244, %247 in 0 : vector<32x256xf32>, vector<32x256xf32> -> vector<64x256xf32>
    %249 = arith.truncf %248 : vector<64x256xf32> to vector<64x256xbf16>
    %cst_63 = arith.constant dense<0.000000e+00> : vector<32x256xf32>
    %250 = tpu.matmul %220, %249, %cst_63 {dimension_numbers = #tpu.dot_dimension_numbers<[1], [0], [0], [1], [0, 0, 1, 1], [], []>} : vector<32x64xbf16>, vector<64x256xbf16>, vector<32x256xf32> -> vector<32x256xf32>
    %251 = vector.broadcast %222 : vector<32x1xf32> to vector<32x256xf32>
    %252 = arith.addf %250, %251 : vector<32x256xf32>
    %cst_64 = arith.constant 0.000000e+00 : f32
    %253 = vector.broadcast %cst_64 : f32 to vector<32x256xf32>
    %254 = arith.maximumf %252, %253 : vector<32x256xf32>
    %255 = vector.extract_strided_slice %254 {offsets = [0, 0], sizes = [32, 128], strides = [1, 1]} : vector<32x256xf32> to vector<32x128xf32>
    %256 = vector.extract_strided_slice %254 {offsets = [0, 0], sizes = [32, 1], strides = [1, 1]} : vector<32x256xf32> to vector<32x1xf32>
    %c8_i32_65 = arith.constant 8 : i32
    %257 = tpu.dynamic_rotate %255 by %c8_i32_65 dim 1 : vector<32x128xf32>, i32 -> vector<32x128xf32>
    %c8_i32_66 = arith.constant 8 : i32
    %258 = vector.broadcast %c8_i32_66 : i32 to vector<1x128xi32>
    %259 = arith.cmpi slt, %0, %258 : vector<1x128xi32>
    %260 = vector.shape_cast %259 : vector<1x128xi1> to vector<1x128xi1>
    %261 = vector.broadcast %260 : vector<1x128xi1> to vector<32x128xi1>
    %262 = vector.shape_cast %256 : vector<32x1xf32> to vector<32x1xf32>
    %263 = vector.broadcast %262 : vector<32x1xf32> to vector<32x128xf32>
    %264 = arith.select %261, %263, %257 : vector<32x128xi1>, vector<32x128xf32>
    %265 = vector.extract_strided_slice %254 {offsets = [0, 128], sizes = [32, 128], strides = [1, 1]} : vector<32x256xf32> to vector<32x128xf32>
    %266 = vector.extract_strided_slice %254 {offsets = [0, 128], sizes = [32, 1], strides = [1, 1]} : vector<32x256xf32> to vector<32x1xf32>
    %c8_i32_67 = arith.constant 8 : i32
    %267 = tpu.dynamic_rotate %265 by %c8_i32_67 dim 1 : vector<32x128xf32>, i32 -> vector<32x128xf32>
    %c8_i32_68 = arith.constant 8 : i32
    %268 = vector.broadcast %c8_i32_68 : i32 to vector<1x128xi32>
    %269 = arith.cmpi slt, %0, %268 : vector<1x128xi32>
    %270 = vector.shape_cast %269 : vector<1x128xi1> to vector<1x128xi1>
    %271 = vector.broadcast %270 : vector<1x128xi1> to vector<32x128xi1>
    %272 = vector.shape_cast %266 : vector<32x1xf32> to vector<32x1xf32>
    %273 = vector.broadcast %272 : vector<32x1xf32> to vector<32x128xf32>
    %274 = arith.select %271, %273, %267 : vector<32x128xi1>, vector<32x128xf32>
    %275 = tpu.concatenate %264, %274 in 1 : vector<32x128xf32>, vector<32x128xf32> -> vector<32x256xf32>
    %276 = vector.extract_strided_slice %254 {offsets = [0, 0], sizes = [32, 128], strides = [1, 1]} : vector<32x256xf32> to vector<32x128xf32>
    %277 = vector.extract_strided_slice %254 {offsets = [0, 128], sizes = [32, 128], strides = [1, 1]} : vector<32x256xf32> to vector<32x128xf32>
    %278 = tpu.concatenate %276, %277 in 1 : vector<32x128xf32>, vector<32x128xf32> -> vector<32x256xf32>
    %279 = tpu.concatenate %275, %278 in 0 : vector<32x256xf32>, vector<32x256xf32> -> vector<64x256xf32>
    %280 = arith.truncf %279 : vector<64x256xf32> to vector<64x256xbf16>
    %cst_69 = arith.constant dense<0.000000e+00> : vector<32x256xf32>
    %281 = tpu.matmul %221, %280, %cst_69 {dimension_numbers = #tpu.dot_dimension_numbers<[1], [0], [0], [1], [0, 0, 1, 1], [], []>} : vector<32x64xbf16>, vector<64x256xbf16>, vector<32x256xf32> -> vector<32x256xf32>
    %282 = vector.broadcast %223 : vector<32x1xf32> to vector<32x256xf32>
    %283 = arith.addf %281, %282 : vector<32x256xf32>
    %cst_70 = arith.constant 0.000000e+00 : f32
    %284 = vector.broadcast %cst_70 : f32 to vector<32x256xf32>
    %285 = arith.maximumf %283, %284 : vector<32x256xf32>
    %286 = arith.addf %285, %219 : vector<32x256xf32>
    %cst_71 = arith.constant 0.000000e+00 : f32
    %287 = vector.broadcast %cst_71 : f32 to vector<32x256xf32>
    %288 = arith.maximumf %286, %287 : vector<32x256xf32>
    %289 = vector.extract_strided_slice %288 {offsets = [0, 0], sizes = [32, 128], strides = [1, 1]} : vector<32x256xf32> to vector<32x128xf32>
    %c0_72 = arith.constant 0 : index
    %c0_73 = arith.constant 0 : index
    %c0_74 = arith.constant 0 : index
    %290 = vector.load %arg12[%c0_72, %c0_73, %c0_74] : memref<2x32x128xf32, #tpu.memory_space<vmem>>, vector<1x32x128xf32>
    %291 = vector.shape_cast %290 : vector<1x32x128xf32> to vector<32x128xf32>
    %292 = vector.shape_cast %289 : vector<32x128xf32> to vector<1x32x128xf32>
    tpu.vector_store %arg12[%c0_72, %c0_73, %c0_74], %292 {strides = array<i32>} : memref<2x32x128xf32, #tpu.memory_space<vmem>>, vector<1x32x128xf32>,
    %293 = vector.extract_strided_slice %288 {offsets = [0, 128], sizes = [32, 128], strides = [1, 1]} : vector<32x256xf32> to vector<32x128xf32>
    %c1_75 = arith.constant 1 : index
    %c0_76 = arith.constant 0 : index
    %c0_77 = arith.constant 0 : index
    %294 = vector.load %arg12[%c1_75, %c0_76, %c0_77] : memref<2x32x128xf32, #tpu.memory_space<vmem>>, vector<1x32x128xf32>
    %295 = vector.shape_cast %294 : vector<1x32x128xf32> to vector<32x128xf32>
    %296 = vector.shape_cast %293 : vector<32x128xf32> to vector<1x32x128xf32>
    tpu.vector_store %arg12[%c1_75, %c0_76, %c0_77], %296 {strides = array<i32>} : memref<2x32x128xf32, #tpu.memory_space<vmem>>, vector<1x32x128xf32>,
    return
  }
  func.func @transform_0(%arg0: i32) -> (i32, i32, i32) {
    %c0_i32 = arith.constant 0 : i32
    %c0_i32_0 = arith.constant 0 : i32
    %c0_i32_1 = arith.constant 0 : i32
    return %arg0, %c0_i32, %c0_i32_0 : i32, i32, i32
  }
  func.func @transform_1(%arg0: i32) -> (i32, i32) {
    %c0_i32 = arith.constant 0 : i32
    %c0_i32_0 = arith.constant 0 : i32
    %c0_i32_1 = arith.constant 0 : i32
    return %c0_i32, %c0_i32_0 : i32, i32
  }
  func.func @transform_2(%arg0: i32) -> (i32, i32) {
    %c0_i32 = arith.constant 0 : i32
    %c0_i32_0 = arith.constant 0 : i32
    %c0_i32_1 = arith.constant 0 : i32
    return %c0_i32, %c0_i32_0 : i32, i32
  }
  func.func @transform_3(%arg0: i32) -> (i32, i32) {
    %c0_i32 = arith.constant 0 : i32
    %c0_i32_0 = arith.constant 0 : i32
    %c0_i32_1 = arith.constant 0 : i32
    return %c0_i32, %c0_i32_0 : i32, i32
  }
  func.func @transform_4(%arg0: i32) -> (i32, i32) {
    %c0_i32 = arith.constant 0 : i32
    %c0_i32_0 = arith.constant 0 : i32
    %c0_i32_1 = arith.constant 0 : i32
    return %c0_i32, %c0_i32_0 : i32, i32
  }
  func.func @transform_5(%arg0: i32) -> (i32, i32) {
    %c0_i32 = arith.constant 0 : i32
    %c0_i32_0 = arith.constant 0 : i32
    %c0_i32_1 = arith.constant 0 : i32
    return %c0_i32, %c0_i32_0 : i32, i32
  }
  func.func @transform_6(%arg0: i32) -> (i32, i32) {
    %c0_i32 = arith.constant 0 : i32
    %c0_i32_0 = arith.constant 0 : i32
    %c0_i32_1 = arith.constant 0 : i32
    return %c0_i32, %c0_i32_0 : i32, i32
  }
  func.func @transform_7(%arg0: i32) -> (i32, i32) {
    %c0_i32 = arith.constant 0 : i32
    %c0_i32_0 = arith.constant 0 : i32
    %c0_i32_1 = arith.constant 0 : i32
    return %c0_i32, %c0_i32_0 : i32, i32
  }
  func.func @transform_8(%arg0: i32) -> (i32, i32) {
    %c0_i32 = arith.constant 0 : i32
    %c0_i32_0 = arith.constant 0 : i32
    %c0_i32_1 = arith.constant 0 : i32
    return %c0_i32, %c0_i32_0 : i32, i32
  }
  func.func @transform_9(%arg0: i32) -> (i32, i32) {
    %c0_i32 = arith.constant 0 : i32
    %c0_i32_0 = arith.constant 0 : i32
    %c0_i32_1 = arith.constant 0 : i32
    return %c0_i32, %c0_i32_0 : i32, i32
  }
  func.func @transform_10(%arg0: i32) -> (i32, i32) {
    %c0_i32 = arith.constant 0 : i32
    %c0_i32_0 = arith.constant 0 : i32
    %c0_i32_1 = arith.constant 0 : i32
    return %c0_i32, %c0_i32_0 : i32, i32
  }
  func.func @transform_11(%arg0: i32) -> (i32, i32, i32) {
    %c0_i32 = arith.constant 0 : i32
    %c0_i32_0 = arith.constant 0 : i32
    %c0_i32_1 = arith.constant 0 : i32
    return %arg0, %c0_i32, %c0_i32_0 : i32, i32, i32
  }
}

</mosaic_0001>

<llo_original>
// kernel: _lambda_.1
$region0: #{_lambda_.1}
  #allocation0 [shape = 'u32[]', space=smem, size = 0x4, offset = 0x4, fixed_abs, tag = 'smem constant byte address 0x4 - core index']
  #allocation1 [shape = 'u32[72,128]{1,0:T(1,128)}', space=vmem, size = 0x9000, scoped, tag = 'internal scratch']
  %s0 = inlined_call_operand.vmem [shape: f32[2,16,128], index: 0, kind: input, shape index: {}]
  %s1 = inlined_call_operand.vmem [shape: f32[32,9], index: 1, kind: input, shape index: {}]
  %s2 = inlined_call_operand.vmem [shape: bf16[32,32], index: 2, kind: input, shape index: {}]
  %s3 = inlined_call_operand.vmem [shape: bf16[32,64], index: 3, kind: input, shape index: {}]
  %s4 = inlined_call_operand.vmem [shape: bf16[32,16], index: 4, kind: input, shape index: {}]
  %s5 = inlined_call_operand.vmem [shape: bf16[32,64], index: 5, kind: input, shape index: {}]
  %s6 = inlined_call_operand.vmem [shape: bf16[32,64], index: 6, kind: input, shape index: {}]
  %s7 = inlined_call_operand.vmem [shape: bf16[32,64], index: 7, kind: input, shape index: {}]
  %s8 = inlined_call_operand.vmem [shape: bf16[32,64], index: 8, kind: input, shape index: {}]
  %s9 = inlined_call_operand.vmem [shape: bf16[32,64], index: 9, kind: input, shape index: {}]
  %s10 = inlined_call_operand.vmem [shape: bf16[32,64], index: 10, kind: input, shape index: {}]
  %s11 = inlined_call_operand.vmem [shape: f32[2,32,128], index: 11, kind: output, shape index: {}]
  %s12 = sld [smem:[#allocation0]]
  $region54: #{_lambda_.1} parent=0
    _
  %s14 = ssub.s32 1, %s12
  %s15 = scalar_select 0, %s14, %s12
  // Predicated region
  $region2: #{_lambda_.1} parent=0 // pred_check
    _
  $region3: #{_lambda_.1} parent=0 // pred_check_branch
    %17 = sbr.rel (0) target = $region5
  $region4: #{_lambda_.1} parent=0 // pred_region
    _
  $region5: #{_lambda_.1} parent=0 // pred_fallthru
    _
  // Predicated region
  $region6: #{_lambda_.1} parent=0 // pred_check
    _
  $region7: #{_lambda_.1} parent=0 // pred_check_branch
    %19 = sbr.rel (0) target = $region9
  $region8: #{_lambda_.1} parent=0 // pred_region
    _
  $region9: #{_lambda_.1} parent=0 // pred_fallthru
    _
  // Predicated region
  $region10: #{_lambda_.1} parent=0 // pred_check
    _
  $region11: #{_lambda_.1} parent=0 // pred_check_branch
    %21 = sbr.rel (0) target = $region13
  $region12: #{_lambda_.1} parent=0 // pred_region
    _
  $region13: #{_lambda_.1} parent=0 // pred_fallthru
    _
  // Predicated region
  $region14: #{_lambda_.1} parent=0 // pred_check
    _
  $region15: #{_lambda_.1} parent=0 // pred_check_branch
    %23 = sbr.rel (0) target = $region17
  $region16: #{_lambda_.1} parent=0 // pred_region
    _
  $region17: #{_lambda_.1} parent=0 // pred_fallthru
    _
  // Predicated region
  $region18: #{_lambda_.1} parent=0 // pred_check
    _
  $region19: #{_lambda_.1} parent=0 // pred_check_branch
    %25 = sbr.rel (0) target = $region21
  $region20: #{_lambda_.1} parent=0 // pred_region
    _
  $region21: #{_lambda_.1} parent=0 // pred_fallthru
    _
  // Predicated region
  $region22: #{_lambda_.1} parent=0 // pred_check
    _
  $region23: #{_lambda_.1} parent=0 // pred_check_branch
    %27 = sbr.rel (0) target = $region25
  $region24: #{_lambda_.1} parent=0 // pred_region
    _
  $region25: #{_lambda_.1} parent=0 // pred_fallthru
    _
  // Predicated region
  $region26: #{_lambda_.1} parent=0 // pred_check
    _
  $region27: #{_lambda_.1} parent=0 // pred_check_branch
    %29 = sbr.rel (0) target = $region29
  $region28: #{_lambda_.1} parent=0 // pred_region
    _
  $region29: #{_lambda_.1} parent=0 // pred_fallthru
    _
  // Predicated region
  $region30: #{_lambda_.1} parent=0 // pred_check
    _
  $region31: #{_lambda_.1} parent=0 // pred_check_branch
    %31 = sbr.rel (0) target = $region33
  $region32: #{_lambda_.1} parent=0 // pred_region
    _
  $region33: #{_lambda_.1} parent=0 // pred_fallthru
    _
  // Predicated region
  $region34: #{_lambda_.1} parent=0 // pred_check
    _
  $region35: #{_lambda_.1} parent=0 // pred_check_branch
    %33 = sbr.rel (0) target = $region37
  $region36: #{_lambda_.1} parent=0 // pred_region
    _
  $region37: #{_lambda_.1} parent=0 // pred_fallthru
    _
  // Predicated region
  $region38: #{_lambda_.1} parent=0 // pred_check
    _
  $region39: #{_lambda_.1} parent=0 // pred_check_branch
    %35 = sbr.rel (0) target = $region41
  $region40: #{_lambda_.1} parent=0 // pred_region
    _
  $region41: #{_lambda_.1} parent=0 // pred_fallthru
    _
  // Predicated region
  $region42: #{_lambda_.1} parent=0 // pred_check
    _
  $region43: #{_lambda_.1} parent=0 // pred_check_branch
    %37 = sbr.rel (0) target = $region45
  $region44: #{_lambda_.1} parent=0 // pred_region
    _
  $region45: #{_lambda_.1} parent=0 // pred_fallthru
    _
  %v39 = vlaneseq
  %v40 = vand.u32 %v39, 127
  %v41 = vld [vmem:[%s1] sm:$0xff]
  %v42 = vld [vmem:[%s1 + $0x8] sm:$0xff]
  %v43 = vld [vmem:[%s1 + $0x10] sm:$0xff]
  %v44 = vld [vmem:[%s1 + $0x18] sm:$0xff]
  %v45 = vld [vmem:[%s0] sm:$0xff]
  %v46 = vld [vmem:[%s0 + $0x8] sm:$0xff]
  %s47 = scalar_lea.vmem %s0, 16
  %v48 = vld [vmem:[%s47] sm:$0xff]
  %v49 = vld [vmem:[%s47 + $0x8] sm:$0xff]
  %v50 = vld [vmem:[%s2] sm:$0xf]
  %v51 = vld [vmem:[%s2 + $0x4] sm:$0xf]
  %v52 = vld [vmem:[%s2 + $0x8] sm:$0xf]
  %v53 = vld [vmem:[%s2 + $0xc] sm:$0xf]
  %v54 = vld [vmem:[%s3] sm:$0xf]
  %v55 = vld [vmem:[%s3 + $0x4] sm:$0xf]
  %v56 = vld [vmem:[%s3 + $0x8] sm:$0xf]
  %v57 = vld [vmem:[%s3 + $0xc] sm:$0xf]
  %v58 = vld [vmem:[%s4] sm:$0xf]
  %v59 = vld [vmem:[%s4 + $0x4] sm:$0xf]
  %v60 = vld [vmem:[%s4 + $0x8] sm:$0xf]
  %v61 = vld [vmem:[%s4 + $0xc] sm:$0xf]
  %62 = vrot.lane.b32.xlu0 %v45, 1
  %v63 = vpop.permute.xlu0 %62
  %64 = vrot.lane.b32.xlu0 %v46, 1
  %v65 = vpop.permute.xlu0 %64
  %vm66 = vcmp.lt.s32.totalorder %v40, 1
  %v67 = vsel %vm66, 1, 0
  %vm68 = vcmp.eq.s32.totalorder %v67, 1
  %70 = vset.pattern.permute.xlu0 0
  %71 = vperm.xlu0 %70, %v45
  %v72 = vpop.permute.xlu0 %71
  %75 = vset.pattern.permute.xlu0 0
  %76 = vperm.xlu0 %75, %v46
  %v77 = vpop.permute.xlu0 %76
  %v79 = vsel %vm68, %v72, %v63
  %v80 = vsel %vm68, %v77, %v65
  %81 = vrot.lane.b32.xlu0 %v48, 1
  %v82 = vpop.permute.xlu0 %81
  %83 = vrot.lane.b32.xlu0 %v49, 1
  %v84 = vpop.permute.xlu0 %83
  %86 = vset.pattern.permute.xlu0 0
  %87 = vperm.xlu0 %86, %v48
  %v88 = vpop.permute.xlu0 %87
  %91 = vset.pattern.permute.xlu0 0
  %92 = vperm.xlu0 %91, %v49
  %v93 = vpop.permute.xlu0 %92
  %v95 = vsel %vm68, %v88, %v82
  %v96 = vsel %vm68, %v93, %v84
  %v97 = vpack.c.bf16 %v80, %v79
  %v98 = vpack.c.bf16 %v96, %v95
  %v99 = vpack.c.bf16 %v46, %v45
  %v100 = vpack.c.bf16 %v49, %v48
  %102 = vset.pattern.permute.xlu0 0
  %103 = vperm.xlu0 %102, %v41
  %v104 = vpop.permute.xlu0 %103
  %107 = vset.pattern.permute.xlu0 0
  %108 = vperm.xlu0 %107, %v42
  %v109 = vpop.permute.xlu0 %108
  %112 = vset.pattern.permute.xlu0 0
  %113 = vperm.xlu0 %112, %v43
  %v114 = vpop.permute.xlu0 %113
  %117 = vset.pattern.permute.xlu0 0
  %118 = vperm.xlu0 %117, %v44
  %v119 = vpop.permute.xlu0 %118
  %v125 = vunpack.c.l.b16 %v50
  %v126 = vunpack.c.l.b16 %v51
  %v127 = vunpack.c.l.b16 %v52
  %v128 = vunpack.c.l.b16 %v53
  %v129 = vpack.c.b16 %v126, %v125
  %v130 = vpack.c.b16 %v128, %v127
  %vm131 = vcmask 261120
  %v133 = vsel %vm131, %v129, 0
  %v136 = vsel %vm131, %v130, 0
  %138 = vmatpush.bf16.msra.mxu0 0
  %139 = vmatpush.bf16.msra.mxu0 0
  %140 = vmatpush.bf16.msra.mxu0 0
  %141 = vmatpush.bf16.msra.mxu0 0
  %142 = vmatpush.bf16.msra.mxu0 0
  %143 = vmatpush.bf16.msra.mxu0 0
  %144 = vmatpush.bf16.msra.mxu0 %v99
  %145 = vmatpush.bf16.msra.mxu0 %v97
  %146 = vmatmul.bf16.gmra.mxu0 %v133
  %v147 = vpop.f32.mrf.mxu0
  %v148 = vadd.f32 %v104, %v147
  %v149 = vpop.f32.mrf.mxu0
  %v150 = vadd.f32 %v109, %v149
  %151 = vmatmul.bf16.gmra.mxu0 %v136
  %v152 = vpop.f32.mrf.mxu0
  %v153 = vadd.f32 %v114, %v152
  %v154 = vpop.f32.mrf.mxu0
  %v155 = vadd.f32 %v119, %v154
  %156 = vdwg.mxu0
  %157 = vmatpush.bf16.msra.mxu0 0
  %158 = vmatpush.bf16.msra.mxu0 0
  %159 = vmatpush.bf16.msra.mxu0 0
  %160 = vmatpush.bf16.msra.mxu0 0
  %161 = vmatpush.bf16.msra.mxu0 0
  %162 = vmatpush.bf16.msra.mxu0 0
  %163 = vmatpush.bf16.msra.mxu0 %v100
  %164 = vmatpush.bf16.msra.mxu0 %v98
  %165 = vmatmul.bf16.gmra.mxu0 %v133
  %v166 = vpop.f32.mrf.mxu0
  %v167 = vadd.f32 %v104, %v166
  %v168 = vpop.f32.mrf.mxu0
  %v169 = vadd.f32 %v109, %v168
  %170 = vmatmul.bf16.gmra.mxu0 %v136
  %v171 = vpop.f32.mrf.mxu0
  %v172 = vadd.f32 %v114, %v171
  %v173 = vpop.f32.mrf.mxu0
  %v174 = vadd.f32 %v119, %v173
  %175 = vdwg.mxu0
  %v176 = vmax.f32 %v148, 0.0
  %v177 = vmax.f32 %v167, 0.0
  %v178 = vmax.f32 %v150, 0.0
  %v179 = vmax.f32 %v169, 0.0
  %v180 = vmax.f32 %v153, 0.0
  %v181 = vmax.f32 %v172, 0.0
  %v182 = vmax.f32 %v155, 0.0
  %v183 = vmax.f32 %v174, 0.0
  %184 = vrot.lane.b32.xlu0 %v176, 1
  %v185 = vpop.permute.xlu0 %184
  %186 = vrot.lane.b32.xlu0 %v178, 1
  %v187 = vpop.permute.xlu0 %186
  %188 = vrot.lane.b32.xlu0 %v180, 1
  %v189 = vpop.permute.xlu0 %188
  %190 = vrot.lane.b32.xlu0 %v182, 1
  %v191 = vpop.permute.xlu0 %190
  %193 = vset.pattern.permute.xlu0 0
  %194 = vperm.xlu0 %193, %v176
  %v195 = vpop.permute.xlu0 %194
  %198 = vset.pattern.permute.xlu0 0
  %199 = vperm.xlu0 %198, %v178
  %v200 = vpop.permute.xlu0 %199
  %203 = vset.pattern.permute.xlu0 0
  %204 = vperm.xlu0 %203, %v180
  %v205 = vpop.permute.xlu0 %204
  %208 = vset.pattern.permute.xlu0 0
  %209 = vperm.xlu0 %208, %v182
  %v210 = vpop.permute.xlu0 %209
  %v212 = vsel %vm68, %v195, %v185
  %v213 = vsel %vm68, %v200, %v187
  %v214 = vsel %vm68, %v205, %v189
  %v215 = vsel %vm68, %v210, %v191
  %216 = vrot.lane.b32.xlu0 %v177, 1
  %v217 = vpop.permute.xlu0 %216
  %218 = vrot.lane.b32.xlu0 %v179, 1
  %v219 = vpop.permute.xlu0 %218
  %220 = vrot.lane.b32.xlu0 %v181, 1
  %v221 = vpop.permute.xlu0 %220
  %222 = vrot.lane.b32.xlu0 %v183, 1
  %v223 = vpop.permute.xlu0 %222
  %225 = vset.pattern.permute.xlu0 0
  %226 = vperm.xlu0 %225, %v177
  %v227 = vpop.permute.xlu0 %226
  %230 = vset.pattern.permute.xlu0 0
  %231 = vperm.xlu0 %230, %v179
  %v232 = vpop.permute.xlu0 %231
  %235 = vset.pattern.permute.xlu0 0
  %236 = vperm.xlu0 %235, %v181
  %v237 = vpop.permute.xlu0 %236
  %240 = vset.pattern.permute.xlu0 0
  %241 = vperm.xlu0 %240, %v183
  %v242 = vpop.permute.xlu0 %241
  %v244 = vsel %vm68, %v227, %v217
  %v245 = vsel %vm68, %v232, %v219
  %v246 = vsel %vm68, %v237, %v221
  %v247 = vsel %vm68, %v242, %v223
  %v248 = vpack.c.bf16 %v213, %v212
  %v249 = vpack.c.bf16 %v245, %v244
  %v250 = vpack.c.bf16 %v215, %v214
  %v251 = vpack.c.bf16 %v247, %v246
  %v252 = vpack.c.bf16 %v178, %v176
  %v253 = vpack.c.bf16 %v179, %v177
  %v254 = vpack.c.bf16 %v182, %v180
  %v255 = vpack.c.bf16 %v183, %v181
  %256 = vset.pattern.permute.xlu0 1
  %257 = vperm.xlu0 %256, %v41
  %v258 = vpop.permute.xlu0 %257
  %260 = vset.pattern.permute.xlu0 1
  %261 = vperm.xlu0 %260, %v42
  %v262 = vpop.permute.xlu0 %261
  %264 = vset.pattern.permute.xlu0 1
  %265 = vperm.xlu0 %264, %v43
  %v266 = vpop.permute.xlu0 %265
  %268 = vset.pattern.permute.xlu0 1
  %269 = vperm.xlu0 %268, %v44
  %v270 = vpop.permute.xlu0 %269
  %v276 = vunpack.c.l.b16 %v54
  %v277 = vunpack.c.l.b16 %v55
  %v278 = vunpack.c.l.b16 %v56
  %v279 = vunpack.c.l.b16 %v57
  %v280 = vpack.c.b16 %v277, %v276
  %v281 = vpack.c.b16 %v279, %v278
  %vm282 = vcmask 523264
  %v284 = vsel %vm282, %v280, 0
  %v287 = vsel %vm282, %v281, 0
  %289 = vmatpush.bf16.msra.mxu0 0
  %290 = vmatpush.bf16.msra.mxu0 0
  %291 = vmatpush.bf16.msra.mxu0 0
  %292 = vmatpush.bf16.msra.mxu0 0
  %293 = vmatpush.bf16.msra.mxu0 %v254
  %294 = vmatpush.bf16.msra.mxu0 %v252
  %295 = vmatpush.bf16.msra.mxu0 %v250
  %296 = vmatpush.bf16.msra.mxu0 %v248
  %297 = vmatmul.bf16.gmra.mxu0 %v284
  %v298 = vpop.f32.mrf.mxu0
  %v299 = vadd.f32 %v258, %v298
  %v300 = vpop.f32.mrf.mxu0
  %v301 = vadd.f32 %v262, %v300
  %302 = vmatmul.bf16.gmra.mxu0 %v287
  %v303 = vpop.f32.mrf.mxu0
  %v304 = vadd.f32 %v266, %v303
  %v305 = vpop.f32.mrf.mxu0
  %v306 = vadd.f32 %v270, %v305
  %307 = vdwg.mxu0
  %308 = vmatpush.bf16.msra.mxu0 0
  %309 = vmatpush.bf16.msra.mxu0 0
  %310 = vmatpush.bf16.msra.mxu0 0
  %311 = vmatpush.bf16.msra.mxu0 0
  %312 = vmatpush.bf16.msra.mxu0 %v255
  %313 = vmatpush.bf16.msra.mxu0 %v253
  %314 = vmatpush.bf16.msra.mxu0 %v251
  %315 = vmatpush.bf16.msra.mxu0 %v249
  %316 = vmatmul.bf16.gmra.mxu0 %v284
  %v317 = vpop.f32.mrf.mxu0
  %v318 = vadd.f32 %v258, %v317
  %v319 = vpop.f32.mrf.mxu0
  %v320 = vadd.f32 %v262, %v319
  %321 = vmatmul.bf16.gmra.mxu0 %v287
  %v322 = vpop.f32.mrf.mxu0
  %v323 = vadd.f32 %v266, %v322
  %v324 = vpop.f32.mrf.mxu0
  %v325 = vadd.f32 %v270, %v324
  %326 = vdwg.mxu0
  %v327 = vmax.f32 %v299, 0.0
  %v328 = vmax.f32 %v318, 0.0
  %v329 = vmax.f32 %v301, 0.0
  %v330 = vmax.f32 %v320, 0.0
  %v331 = vmax.f32 %v304, 0.0
  %v332 = vmax.f32 %v323, 0.0
  %v333 = vmax.f32 %v306, 0.0
  %v334 = vmax.f32 %v325, 0.0
  %335 = vset.pattern.permute.xlu0 2
  %336 = vperm.xlu0 %335, %v41
  %v337 = vpop.permute.xlu0 %336
  %339 = vset.pattern.permute.xlu0 2
  %340 = vperm.xlu0 %339, %v42
  %v341 = vpop.permute.xlu0 %340
  %343 = vset.pattern.permute.xlu0 2
  %344 = vperm.xlu0 %343, %v43
  %v345 = vpop.permute.xlu0 %344
  %347 = vset.pattern.permute.xlu0 2
  %348 = vperm.xlu0 %347, %v44
  %v349 = vpop.permute.xlu0 %348
  %v355 = vunpack.c.l.b16 %v58
  %v356 = vunpack.c.l.b16 %v59
  %v357 = vunpack.c.l.b16 %v60
  %v358 = vunpack.c.l.b16 %v61
  %v359 = vpack.c.b16 %v356, %v355
  %v360 = vpack.c.b16 %v358, %v357
  %vm361 = vcmask 130048
  %v363 = vsel %vm361, %v359, 0
  %v366 = vsel %vm361, %v360, 0
  %368 = vmatpush.bf16.msra.mxu0 0
  %369 = vmatpush.bf16.msra.mxu0 0
  %370 = vmatpush.bf16.msra.mxu0 0
  %371 = vmatpush.bf16.msra.mxu0 0
  %372 = vmatpush.bf16.msra.mxu0 0
  %373 = vmatpush.bf16.msra.mxu0 0
  %374 = vmatpush.bf16.msra.mxu0 0
  %375 = vmatpush.bf16.msra.mxu0 %v99
  %376 = vmatmul.bf16.gmra.mxu0 %v363
  %v377 = vpop.f32.mrf.mxu0
  %v378 = vadd.f32 %v337, %v377
  %v379 = vpop.f32.mrf.mxu0
  %v380 = vadd.f32 %v341, %v379
  %381 = vmatmul.bf16.gmra.mxu0 %v366
  %v382 = vpop.f32.mrf.mxu0
  %v383 = vadd.f32 %v345, %v382
  %v384 = vpop.f32.mrf.mxu0
  %v385 = vadd.f32 %v349, %v384
  %386 = vdwg.mxu0
  %387 = vmatpush.bf16.msra.mxu0 0
  %388 = vmatpush.bf16.msra.mxu0 0
  %389 = vmatpush.bf16.msra.mxu0 0
  %390 = vmatpush.bf16.msra.mxu0 0
  %391 = vmatpush.bf16.msra.mxu0 0
  %392 = vmatpush.bf16.msra.mxu0 0
  %393 = vmatpush.bf16.msra.mxu0 0
  %394 = vmatpush.bf16.msra.mxu0 %v100
  %395 = vmatmul.bf16.gmra.mxu0 %v363
  %v396 = vpop.f32.mrf.mxu0
  %v397 = vadd.f32 %v337, %v396
  %v398 = vpop.f32.mrf.mxu0
  %v399 = vadd.f32 %v341, %v398
  %400 = vmatmul.bf16.gmra.mxu0 %v366
  %v401 = vpop.f32.mrf.mxu0
  %v402 = vadd.f32 %v345, %v401
  %v403 = vpop.f32.mrf.mxu0
  %v404 = vadd.f32 %v349, %v403
  %405 = vdwg.mxu0
  %v406 = vadd.f32 %v327, %v378
  %v407 = vadd.f32 %v328, %v397
  %v408 = vadd.f32 %v329, %v380
  %v409 = vadd.f32 %v330, %v399
  %v410 = vadd.f32 %v331, %v383
  %v411 = vadd.f32 %v332, %v402
  %v412 = vadd.f32 %v333, %v385
  %v413 = vadd.f32 %v334, %v404
  %v414 = vmax.f32 %v406, 0.0
  %v415 = vmax.f32 %v407, 0.0
  %v416 = vmax.f32 %v408, 0.0
  %v417 = vmax.f32 %v409, 0.0
  %v418 = vmax.f32 %v410, 0.0
  %v419 = vmax.f32 %v411, 0.0
  %v420 = vmax.f32 %v412, 0.0
  %v421 = vmax.f32 %v413, 0.0
  %v422 = vld [vmem:[%s5] sm:$0xf]
  %v423 = vld [vmem:[%s5 + $0x4] sm:$0xf]
  %v424 = vld [vmem:[%s5 + $0x8] sm:$0xf]
  %v425 = vld [vmem:[%s5 + $0xc] sm:$0xf]
  %v426 = vld [vmem:[%s6] sm:$0xf]
  %v427 = vld [vmem:[%s6 + $0x4] sm:$0xf]
  %v428 = vld [vmem:[%s6 + $0x8] sm:$0xf]
  %v429 = vld [vmem:[%s6 + $0xc] sm:$0xf]
  %430 = vrot.lane.b32.xlu0 %v414, 2
  %v431 = vpop.permute.xlu0 %430
  %432 = vrot.lane.b32.xlu0 %v416, 2
  %v433 = vpop.permute.xlu0 %432
  %434 = vrot.lane.b32.xlu0 %v418, 2
  %v435 = vpop.permute.xlu0 %434
  %436 = vrot.lane.b32.xlu0 %v420, 2
  %v437 = vpop.permute.xlu0 %436
  %vm438 = vcmp.lt.s32.totalorder %v40, 2
  %v439 = vsel %vm438, 1, 0
  %vm440 = vcmp.eq.s32.totalorder %v439, 1
  %442 = vset.pattern.permute.xlu0 0
  %443 = vperm.xlu0 %442, %v414
  %v444 = vpop.permute.xlu0 %443
  %447 = vset.pattern.permute.xlu0 0
  %448 = vperm.xlu0 %447, %v416
  %v449 = vpop.permute.xlu0 %448
  %452 = vset.pattern.permute.xlu0 0
  %453 = vperm.xlu0 %452, %v418
  %v454 = vpop.permute.xlu0 %453
  %457 = vset.pattern.permute.xlu0 0
  %458 = vperm.xlu0 %457, %v420
  %v459 = vpop.permute.xlu0 %458
  %v461 = vsel %vm440, %v444, %v431
  %v462 = vsel %vm440, %v449, %v433
  %v463 = vsel %vm440, %v454, %v435
  %v464 = vsel %vm440, %v459, %v437
  %465 = vrot.lane.b32.xlu0 %v415, 2
  %v466 = vpop.permute.xlu0 %465
  %467 = vrot.lane.b32.xlu0 %v417, 2
  %v468 = vpop.permute.xlu0 %467
  %469 = vrot.lane.b32.xlu0 %v419, 2
  %v470 = vpop.permute.xlu0 %469
  %471 = vrot.lane.b32.xlu0 %v421, 2
  %v472 = vpop.permute.xlu0 %471
  %474 = vset.pattern.permute.xlu0 0
  %475 = vperm.xlu0 %474, %v415
  %v476 = vpop.permute.xlu0 %475
  %479 = vset.pattern.permute.xlu0 0
  %480 = vperm.xlu0 %479, %v417
  %v481 = vpop.permute.xlu0 %480
  %484 = vset.pattern.permute.xlu0 0
  %485 = vperm.xlu0 %484, %v419
  %v486 = vpop.permute.xlu0 %485
  %489 = vset.pattern.permute.xlu0 0
  %490 = vperm.xlu0 %489, %v421
  %v491 = vpop.permute.xlu0 %490
  %v493 = vsel %vm440, %v476, %v466
  %v494 = vsel %vm440, %v481, %v468
  %v495 = vsel %vm440, %v486, %v470
  %v496 = vsel %vm440, %v491, %v472
  %v497 = vpack.c.bf16 %v462, %v461
  %v498 = vpack.c.bf16 %v494, %v493
  %v499 = vpack.c.bf16 %v464, %v463
  %v500 = vpack.c.bf16 %v496, %v495
  %v501 = vpack.c.bf16 %v416, %v414
  %v502 = vpack.c.bf16 %v417, %v415
  %v503 = vpack.c.bf16 %v420, %v418
  %v504 = vpack.c.bf16 %v421, %v419
  %505 = vset.pattern.permute.xlu0 3
  %506 = vperm.xlu0 %505, %v41
  %v507 = vpop.permute.xlu0 %506
  %509 = vset.pattern.permute.xlu0 3
  %510 = vperm.xlu0 %509, %v42
  %v511 = vpop.permute.xlu0 %510
  %513 = vset.pattern.permute.xlu0 3
  %514 = vperm.xlu0 %513, %v43
  %v515 = vpop.permute.xlu0 %514
  %517 = vset.pattern.permute.xlu0 3
  %518 = vperm.xlu0 %517, %v44
  %v519 = vpop.permute.xlu0 %518
  %v525 = vunpack.c.l.b16 %v422
  %v526 = vunpack.c.l.b16 %v423
  %v527 = vunpack.c.l.b16 %v424
  %v528 = vunpack.c.l.b16 %v425
  %v529 = vpack.c.b16 %v526, %v525
  %v530 = vpack.c.b16 %v528, %v527
  %v532 = vsel %vm282, %v529, 0
  %v535 = vsel %vm282, %v530, 0
  %537 = vmatpush.bf16.msra.mxu0 0
  %538 = vmatpush.bf16.msra.mxu0 0
  %539 = vmatpush.bf16.msra.mxu0 0
  %540 = vmatpush.bf16.msra.mxu0 0
  %541 = vmatpush.bf16.msra.mxu0 %v503
  %542 = vmatpush.bf16.msra.mxu0 %v501
  %543 = vmatpush.bf16.msra.mxu0 %v499
  %544 = vmatpush.bf16.msra.mxu0 %v497
  %545 = vmatmul.bf16.gmra.mxu0 %v532
  %v546 = vpop.f32.mrf.mxu0
  %v547 = vadd.f32 %v507, %v546
  %v548 = vpop.f32.mrf.mxu0
  %v549 = vadd.f32 %v511, %v548
  %550 = vmatmul.bf16.gmra.mxu0 %v535
  %v551 = vpop.f32.mrf.mxu0
  %v552 = vadd.f32 %v515, %v551
  %v553 = vpop.f32.mrf.mxu0
  %v554 = vadd.f32 %v519, %v553
  %555 = vdwg.mxu0
  %556 = vmatpush.bf16.msra.mxu0 0
  %557 = vmatpush.bf16.msra.mxu0 0
  %558 = vmatpush.bf16.msra.mxu0 0
  %559 = vmatpush.bf16.msra.mxu0 0
  %560 = vmatpush.bf16.msra.mxu0 %v504
  %561 = vmatpush.bf16.msra.mxu0 %v502
  %562 = vmatpush.bf16.msra.mxu0 %v500
  %563 = vmatpush.bf16.msra.mxu0 %v498
  %564 = vmatmul.bf16.gmra.mxu0 %v532
  %v565 = vpop.f32.mrf.mxu0
  %v566 = vadd.f32 %v507, %v565
  %v567 = vpop.f32.mrf.mxu0
  %v568 = vadd.f32 %v511, %v567
  %569 = vmatmul.bf16.gmra.mxu0 %v535
  %v570 = vpop.f32.mrf.mxu0
  %v571 = vadd.f32 %v515, %v570
  %v572 = vpop.f32.mrf.mxu0
  %v573 = vadd.f32 %v519, %v572
  %574 = vdwg.mxu0
  %v575 = vmax.f32 %v547, 0.0
  %v576 = vmax.f32 %v566, 0.0
  %v577 = vmax.f32 %v549, 0.0
  %v578 = vmax.f32 %v568, 0.0
  %v579 = vmax.f32 %v552, 0.0
  %v580 = vmax.f32 %v571, 0.0
  %v581 = vmax.f32 %v554, 0.0
  %v582 = vmax.f32 %v573, 0.0
  %583 = vrot.lane.b32.xlu0 %v575, 2
  %v584 = vpop.permute.xlu0 %583
  %585 = vrot.lane.b32.xlu0 %v577, 2
  %v586 = vpop.permute.xlu0 %585
  %587 = vrot.lane.b32.xlu0 %v579, 2
  %v588 = vpop.permute.xlu0 %587
  %589 = vrot.lane.b32.xlu0 %v581, 2
  %v590 = vpop.permute.xlu0 %589
  %592 = vset.pattern.permute.xlu0 0
  %593 = vperm.xlu0 %592, %v575
  %v594 = vpop.permute.xlu0 %593
  %597 = vset.pattern.permute.xlu0 0
  %598 = vperm.xlu0 %597, %v577
  %v599 = vpop.permute.xlu0 %598
  %602 = vset.pattern.permute.xlu0 0
  %603 = vperm.xlu0 %602, %v579
  %v604 = vpop.permute.xlu0 %603
  %607 = vset.pattern.permute.xlu0 0
  %608 = vperm.xlu0 %607, %v581
  %v609 = vpop.permute.xlu0 %608
  %v611 = vsel %vm440, %v594, %v584
  %v612 = vsel %vm440, %v599, %v586
  %v613 = vsel %vm440, %v604, %v588
  %v614 = vsel %vm440, %v609, %v590
  %615 = vrot.lane.b32.xlu0 %v576, 2
  %v616 = vpop.permute.xlu0 %615
  %617 = vrot.lane.b32.xlu0 %v578, 2
  %v618 = vpop.permute.xlu0 %617
  %619 = vrot.lane.b32.xlu0 %v580, 2
  %v620 = vpop.permute.xlu0 %619
  %621 = vrot.lane.b32.xlu0 %v582, 2
  %v622 = vpop.permute.xlu0 %621
  %624 = vset.pattern.permute.xlu0 0
  %625 = vperm.xlu0 %624, %v576
  %v626 = vpop.permute.xlu0 %625
  %629 = vset.pattern.permute.xlu0 0
  %630 = vperm.xlu0 %629, %v578
  %v631 = vpop.permute.xlu0 %630
  %634 = vset.pattern.permute.xlu0 0
  %635 = vperm.xlu0 %634, %v580
  %v636 = vpop.permute.xlu0 %635
  %639 = vset.pattern.permute.xlu0 0
  %640 = vperm.xlu0 %639, %v582
  %v641 = vpop.permute.xlu0 %640
  %v643 = vsel %vm440, %v626, %v616
  %v644 = vsel %vm440, %v631, %v618
  %v645 = vsel %vm440, %v636, %v620
  %v646 = vsel %vm440, %v641, %v622
  %v647 = vpack.c.bf16 %v612, %v611
  %v648 = vpack.c.bf16 %v644, %v643
  %v649 = vpack.c.bf16 %v614, %v613
  %v650 = vpack.c.bf16 %v646, %v645
  %v651 = vpack.c.bf16 %v577, %v575
  %v652 = vpack.c.bf16 %v578, %v576
  %v653 = vpack.c.bf16 %v581, %v579
  %v654 = vpack.c.bf16 %v582, %v580
  %655 = vset.pattern.permute.xlu0 4
  %656 = vperm.xlu0 %655, %v41
  %v657 = vpop.permute.xlu0 %656
  %659 = vset.pattern.permute.xlu0 4
  %660 = vperm.xlu0 %659, %v42
  %v661 = vpop.permute.xlu0 %660
  %663 = vset.pattern.permute.xlu0 4
  %664 = vperm.xlu0 %663, %v43
  %v665 = vpop.permute.xlu0 %664
  %667 = vset.pattern.permute.xlu0 4
  %668 = vperm.xlu0 %667, %v44
  %v669 = vpop.permute.xlu0 %668
  %v675 = vunpack.c.l.b16 %v426
  %v676 = vunpack.c.l.b16 %v427
  %v677 = vunpack.c.l.b16 %v428
  %v678 = vunpack.c.l.b16 %v429
  %v679 = vpack.c.b16 %v676, %v675
  %v680 = vpack.c.b16 %v678, %v677
  %v682 = vsel %vm282, %v679, 0
  %v685 = vsel %vm282, %v680, 0
  %687 = vmatpush.bf16.msra.mxu0 0
  %688 = vmatpush.bf16.msra.mxu0 0
  %689 = vmatpush.bf16.msra.mxu0 0
  %690 = vmatpush.bf16.msra.mxu0 0
  %691 = vmatpush.bf16.msra.mxu0 %v653
  %692 = vmatpush.bf16.msra.mxu0 %v651
  %693 = vmatpush.bf16.msra.mxu0 %v649
  %694 = vmatpush.bf16.msra.mxu0 %v647
  %695 = vmatmul.bf16.gmra.mxu0 %v682
  %v696 = vpop.f32.mrf.mxu0
  %v697 = vadd.f32 %v657, %v696
  %v698 = vpop.f32.mrf.mxu0
  %v699 = vadd.f32 %v661, %v698
  %700 = vmatmul.bf16.gmra.mxu0 %v685
  %v701 = vpop.f32.mrf.mxu0
  %v702 = vadd.f32 %v665, %v701
  %v703 = vpop.f32.mrf.mxu0
  %v704 = vadd.f32 %v669, %v703
  %705 = vdwg.mxu0
  %706 = vmatpush.bf16.msra.mxu0 0
  %707 = vmatpush.bf16.msra.mxu0 0
  %708 = vmatpush.bf16.msra.mxu0 0
  %709 = vmatpush.bf16.msra.mxu0 0
  %710 = vmatpush.bf16.msra.mxu0 %v654
  %711 = vmatpush.bf16.msra.mxu0 %v652
  %712 = vmatpush.bf16.msra.mxu0 %v650
  %713 = vmatpush.bf16.msra.mxu0 %v648
  %714 = vmatmul.bf16.gmra.mxu0 %v682
  %v715 = vpop.f32.mrf.mxu0
  %v716 = vadd.f32 %v657, %v715
  %v717 = vpop.f32.mrf.mxu0
  %v718 = vadd.f32 %v661, %v717
  %719 = vmatmul.bf16.gmra.mxu0 %v685
  %v720 = vpop.f32.mrf.mxu0
  %v721 = vadd.f32 %v665, %v720
  %v722 = vpop.f32.mrf.mxu0
  %v723 = vadd.f32 %v669, %v722
  %724 = vdwg.mxu0
  %v725 = vmax.f32 %v697, 0.0
  %v726 = vmax.f32 %v716, 0.0
  %v727 = vmax.f32 %v699, 0.0
  %v728 = vmax.f32 %v718, 0.0
  %v729 = vmax.f32 %v702, 0.0
  %v730 = vmax.f32 %v721, 0.0
  %v731 = vmax.f32 %v704, 0.0
  %v732 = vmax.f32 %v723, 0.0
  %v733 = vadd.f32 %v725, %v414
  %v734 = vadd.f32 %v726, %v415
  %v735 = vadd.f32 %v727, %v416
  %v736 = vadd.f32 %v728, %v417
  %v737 = vadd.f32 %v729, %v418
  %v738 = vadd.f32 %v730, %v419
  %v739 = vadd.f32 %v731, %v420
  %v740 = vadd.f32 %v732, %v421
  %v741 = vmax.f32 %v733, 0.0
  %v742 = vmax.f32 %v734, 0.0
  %v743 = vmax.f32 %v735, 0.0
  %v744 = vmax.f32 %v736, 0.0
  %v745 = vmax.f32 %v737, 0.0
  %v746 = vmax.f32 %v738, 0.0
  %v747 = vmax.f32 %v739, 0.0
  %v748 = vmax.f32 %v740, 0.0
  %v749 = vld [vmem:[%s7] sm:$0xf]
  %v750 = vld [vmem:[%s7 + $0x4] sm:$0xf]
  %v751 = vld [vmem:[%s7 + $0x8] sm:$0xf]
  %v752 = vld [vmem:[%s7 + $0xc] sm:$0xf]
  %v753 = vld [vmem:[%s8] sm:$0xf]
  %v754 = vld [vmem:[%s8 + $0x4] sm:$0xf]
  %v755 = vld [vmem:[%s8 + $0x8] sm:$0xf]
  %v756 = vld [vmem:[%s8 + $0xc] sm:$0xf]
  %757 = vrot.lane.b32.xlu0 %v741, 4
  %v758 = vpop.permute.xlu0 %757
  %759 = vrot.lane.b32.xlu0 %v743, 4
  %v760 = vpop.permute.xlu0 %759
  %761 = vrot.lane.b32.xlu0 %v745, 4
  %v762 = vpop.permute.xlu0 %761
  %763 = vrot.lane.b32.xlu0 %v747, 4
  %v764 = vpop.permute.xlu0 %763
  %vm765 = vcmp.lt.s32.totalorder %v40, 4
  %v766 = vsel %vm765, 1, 0
  %vm767 = vcmp.eq.s32.totalorder %v766, 1
  %769 = vset.pattern.permute.xlu0 0
  %770 = vperm.xlu0 %769, %v741
  %v771 = vpop.permute.xlu0 %770
  %774 = vset.pattern.permute.xlu0 0
  %775 = vperm.xlu0 %774, %v743
  %v776 = vpop.permute.xlu0 %775
  %779 = vset.pattern.permute.xlu0 0
  %780 = vperm.xlu0 %779, %v745
  %v781 = vpop.permute.xlu0 %780
  %784 = vset.pattern.permute.xlu0 0
  %785 = vperm.xlu0 %784, %v747
  %v786 = vpop.permute.xlu0 %785
  %v788 = vsel %vm767, %v771, %v758
  %v789 = vsel %vm767, %v776, %v760
  %v790 = vsel %vm767, %v781, %v762
  %v791 = vsel %vm767, %v786, %v764
  %792 = vrot.lane.b32.xlu0 %v742, 4
  %v793 = vpop.permute.xlu0 %792
  %794 = vrot.lane.b32.xlu0 %v744, 4
  %v795 = vpop.permute.xlu0 %794
  %796 = vrot.lane.b32.xlu0 %v746, 4
  %v797 = vpop.permute.xlu0 %796
  %798 = vrot.lane.b32.xlu0 %v748, 4
  %v799 = vpop.permute.xlu0 %798
  %801 = vset.pattern.permute.xlu0 0
  %802 = vperm.xlu0 %801, %v742
  %v803 = vpop.permute.xlu0 %802
  %806 = vset.pattern.permute.xlu0 0
  %807 = vperm.xlu0 %806, %v744
  %v808 = vpop.permute.xlu0 %807
  %811 = vset.pattern.permute.xlu0 0
  %812 = vperm.xlu0 %811, %v746
  %v813 = vpop.permute.xlu0 %812
  %816 = vset.pattern.permute.xlu0 0
  %817 = vperm.xlu0 %816, %v748
  %v818 = vpop.permute.xlu0 %817
  %v820 = vsel %vm767, %v803, %v793
  %v821 = vsel %vm767, %v808, %v795
  %v822 = vsel %vm767, %v813, %v797
  %v823 = vsel %vm767, %v818, %v799
  %v824 = vpack.c.bf16 %v789, %v788
  %v825 = vpack.c.bf16 %v821, %v820
  %v826 = vpack.c.bf16 %v791, %v790
  %v827 = vpack.c.bf16 %v823, %v822
  %v828 = vpack.c.bf16 %v743, %v741
  %v829 = vpack.c.bf16 %v744, %v742
  %v830 = vpack.c.bf16 %v747, %v745
  %v831 = vpack.c.bf16 %v748, %v746
  %832 = vset.pattern.permute.xlu0 5
  %833 = vperm.xlu0 %832, %v41
  %v834 = vpop.permute.xlu0 %833
  %836 = vset.pattern.permute.xlu0 5
  %837 = vperm.xlu0 %836, %v42
  %v838 = vpop.permute.xlu0 %837
  %840 = vset.pattern.permute.xlu0 5
  %841 = vperm.xlu0 %840, %v43
  %v842 = vpop.permute.xlu0 %841
  %844 = vset.pattern.permute.xlu0 5
  %845 = vperm.xlu0 %844, %v44
  %v846 = vpop.permute.xlu0 %845
  %v852 = vunpack.c.l.b16 %v749
  %v853 = vunpack.c.l.b16 %v750
  %v854 = vunpack.c.l.b16 %v751
  %v855 = vunpack.c.l.b16 %v752
  %v856 = vpack.c.b16 %v853, %v852
  %v857 = vpack.c.b16 %v855, %v854
  %v859 = vsel %vm282, %v856, 0
  %v862 = vsel %vm282, %v857, 0
  %864 = vmatpush.bf16.msra.mxu0 0
  %865 = vmatpush.bf16.msra.mxu0 0
  %866 = vmatpush.bf16.msra.mxu0 0
  %867 = vmatpush.bf16.msra.mxu0 0
  %868 = vmatpush.bf16.msra.mxu0 %v830
  %869 = vmatpush.bf16.msra.mxu0 %v828
  %870 = vmatpush.bf16.msra.mxu0 %v826
  %871 = vmatpush.bf16.msra.mxu0 %v824
  %872 = vmatmul.bf16.gmra.mxu0 %v859
  %v873 = vpop.f32.mrf.mxu0
  %v874 = vadd.f32 %v834, %v873
  %v875 = vpop.f32.mrf.mxu0
  %v876 = vadd.f32 %v838, %v875
  %877 = vmatmul.bf16.gmra.mxu0 %v862
  %v878 = vpop.f32.mrf.mxu0
  %v879 = vadd.f32 %v842, %v878
  %v880 = vpop.f32.mrf.mxu0
  %v881 = vadd.f32 %v846, %v880
  %882 = vdwg.mxu0
  %883 = vmatpush.bf16.msra.mxu0 0
  %884 = vmatpush.bf16.msra.mxu0 0
  %885 = vmatpush.bf16.msra.mxu0 0
  %886 = vmatpush.bf16.msra.mxu0 0
  %887 = vmatpush.bf16.msra.mxu0 %v831
  %888 = vmatpush.bf16.msra.mxu0 %v829
  %889 = vmatpush.bf16.msra.mxu0 %v827
  %890 = vmatpush.bf16.msra.mxu0 %v825
  %891 = vmatmul.bf16.gmra.mxu0 %v859
  %v892 = vpop.f32.mrf.mxu0
  %v893 = vadd.f32 %v834, %v892
  %v894 = vpop.f32.mrf.mxu0
  %v895 = vadd.f32 %v838, %v894
  %896 = vmatmul.bf16.gmra.mxu0 %v862
  %v897 = vpop.f32.mrf.mxu0
  %v898 = vadd.f32 %v842, %v897
  %v899 = vpop.f32.mrf.mxu0
  %v900 = vadd.f32 %v846, %v899
  %901 = vdwg.mxu0
  %v902 = vmax.f32 %v874, 0.0
  %v903 = vmax.f32 %v893, 0.0
  %v904 = vmax.f32 %v876, 0.0
  %v905 = vmax.f32 %v895, 0.0
  %v906 = vmax.f32 %v879, 0.0
  %v907 = vmax.f32 %v898, 0.0
  %v908 = vmax.f32 %v881, 0.0
  %v909 = vmax.f32 %v900, 0.0
  %910 = vrot.lane.b32.xlu0 %v902, 4
  %v911 = vpop.permute.xlu0 %910
  %912 = vrot.lane.b32.xlu0 %v904, 4
  %v913 = vpop.permute.xlu0 %912
  %914 = vrot.lane.b32.xlu0 %v906, 4
  %v915 = vpop.permute.xlu0 %914
  %916 = vrot.lane.b32.xlu0 %v908, 4
  %v917 = vpop.permute.xlu0 %916
  %919 = vset.pattern.permute.xlu0 0
  %920 = vperm.xlu0 %919, %v902
  %v921 = vpop.permute.xlu0 %920
  %924 = vset.pattern.permute.xlu0 0
  %925 = vperm.xlu0 %924, %v904
  %v926 = vpop.permute.xlu0 %925
  %929 = vset.pattern.permute.xlu0 0
  %930 = vperm.xlu0 %929, %v906
  %v931 = vpop.permute.xlu0 %930
  %934 = vset.pattern.permute.xlu0 0
  %935 = vperm.xlu0 %934, %v908
  %v936 = vpop.permute.xlu0 %935
  %v938 = vsel %vm767, %v921, %v911
  %v939 = vsel %vm767, %v926, %v913
  %v940 = vsel %vm767, %v931, %v915
  %v941 = vsel %vm767, %v936, %v917
  %942 = vrot.lane.b32.xlu0 %v903, 4
  %v943 = vpop.permute.xlu0 %942
  %944 = vrot.lane.b32.xlu0 %v905, 4
  %v945 = vpop.permute.xlu0 %944
  %946 = vrot.lane.b32.xlu0 %v907, 4
  %v947 = vpop.permute.xlu0 %946
  %948 = vrot.lane.b32.xlu0 %v909, 4
  %v949 = vpop.permute.xlu0 %948
  %951 = vset.pattern.permute.xlu0 0
  %952 = vperm.xlu0 %951, %v903
  %v953 = vpop.permute.xlu0 %952
  %956 = vset.pattern.permute.xlu0 0
  %957 = vperm.xlu0 %956, %v905
  %v958 = vpop.permute.xlu0 %957
  %961 = vset.pattern.permute.xlu0 0
  %962 = vperm.xlu0 %961, %v907
  %v963 = vpop.permute.xlu0 %962
  %966 = vset.pattern.permute.xlu0 0
  %967 = vperm.xlu0 %966, %v909
  %v968 = vpop.permute.xlu0 %967
  %v970 = vsel %vm767, %v953, %v943
  %v971 = vsel %vm767, %v958, %v945
  %v972 = vsel %vm767, %v963, %v947
  %v973 = vsel %vm767, %v968, %v949
  %v974 = vpack.c.bf16 %v939, %v938
  %v975 = vpack.c.bf16 %v971, %v970
  %v976 = vpack.c.bf16 %v941, %v940
  %v977 = vpack.c.bf16 %v973, %v972
  %v978 = vpack.c.bf16 %v904, %v902
  %v979 = vpack.c.bf16 %v905, %v903
  %v980 = vpack.c.bf16 %v908, %v906
  %v981 = vpack.c.bf16 %v909, %v907
  %982 = vset.pattern.permute.xlu0 6
  %983 = vperm.xlu0 %982, %v41
  %v984 = vpop.permute.xlu0 %983
  %986 = vset.pattern.permute.xlu0 6
  %987 = vperm.xlu0 %986, %v42
  %v988 = vpop.permute.xlu0 %987
  %990 = vset.pattern.permute.xlu0 6
  %991 = vperm.xlu0 %990, %v43
  %v992 = vpop.permute.xlu0 %991
  %994 = vset.pattern.permute.xlu0 6
  %995 = vperm.xlu0 %994, %v44
  %v996 = vpop.permute.xlu0 %995
  %v1002 = vunpack.c.l.b16 %v753
  %v1003 = vunpack.c.l.b16 %v754
  %v1004 = vunpack.c.l.b16 %v755
  %v1005 = vunpack.c.l.b16 %v756
  %v1006 = vpack.c.b16 %v1003, %v1002
  %v1007 = vpack.c.b16 %v1005, %v1004
  %v1009 = vsel %vm282, %v1006, 0
  %v1012 = vsel %vm282, %v1007, 0
  %1014 = vmatpush.bf16.msra.mxu0 0
  %1015 = vmatpush.bf16.msra.mxu0 0
  %1016 = vmatpush.bf16.msra.mxu0 0
  %1017 = vmatpush.bf16.msra.mxu0 0
  %1018 = vmatpush.bf16.msra.mxu0 %v980
  %1019 = vmatpush.bf16.msra.mxu0 %v978
  %1020 = vmatpush.bf16.msra.mxu0 %v976
  %1021 = vmatpush.bf16.msra.mxu0 %v974
  %1022 = vmatmul.bf16.gmra.mxu0 %v1009
  %v1023 = vpop.f32.mrf.mxu0
  %v1024 = vadd.f32 %v984, %v1023
  %v1025 = vpop.f32.mrf.mxu0
  %v1026 = vadd.f32 %v988, %v1025
  %1027 = vmatmul.bf16.gmra.mxu0 %v1012
  %v1028 = vpop.f32.mrf.mxu0
  %v1029 = vadd.f32 %v992, %v1028
  %v1030 = vpop.f32.mrf.mxu0
  %v1031 = vadd.f32 %v996, %v1030
  %1032 = vdwg.mxu0
  %1033 = vmatpush.bf16.msra.mxu0 0
  %1034 = vmatpush.bf16.msra.mxu0 0
  %1035 = vmatpush.bf16.msra.mxu0 0
  %1036 = vmatpush.bf16.msra.mxu0 0
  %1037 = vmatpush.bf16.msra.mxu0 %v981
  %1038 = vmatpush.bf16.msra.mxu0 %v979
  %1039 = vmatpush.bf16.msra.mxu0 %v977
  %1040 = vmatpush.bf16.msra.mxu0 %v975
  %1041 = vmatmul.bf16.gmra.mxu0 %v1009
  %v1042 = vpop.f32.mrf.mxu0
  %v1043 = vadd.f32 %v984, %v1042
  %v1044 = vpop.f32.mrf.mxu0
  %v1045 = vadd.f32 %v988, %v1044
  %1046 = vmatmul.bf16.gmra.mxu0 %v1012
  %v1047 = vpop.f32.mrf.mxu0
  %v1048 = vadd.f32 %v992, %v1047
  %v1049 = vpop.f32.mrf.mxu0
  %v1050 = vadd.f32 %v996, %v1049
  %1051 = vdwg.mxu0
  %v1052 = vmax.f32 %v1024, 0.0
  %v1053 = vmax.f32 %v1043, 0.0
  %v1054 = vmax.f32 %v1026, 0.0
  %v1055 = vmax.f32 %v1045, 0.0
  %v1056 = vmax.f32 %v1029, 0.0
  %v1057 = vmax.f32 %v1048, 0.0
  %v1058 = vmax.f32 %v1031, 0.0
  %v1059 = vmax.f32 %v1050, 0.0
  %v1060 = vadd.f32 %v1052, %v741
  %v1061 = vadd.f32 %v1053, %v742
  %v1062 = vadd.f32 %v1054, %v743
  %v1063 = vadd.f32 %v1055, %v744
  %v1064 = vadd.f32 %v1056, %v745
  %v1065 = vadd.f32 %v1057, %v746
  %v1066 = vadd.f32 %v1058, %v747
  %v1067 = vadd.f32 %v1059, %v748
  %v1068 = vmax.f32 %v1060, 0.0
  %v1069 = vmax.f32 %v1061, 0.0
  %v1070 = vmax.f32 %v1062, 0.0
  %v1071 = vmax.f32 %v1063, 0.0
  %v1072 = vmax.f32 %v1064, 0.0
  %v1073 = vmax.f32 %v1065, 0.0
  %v1074 = vmax.f32 %v1066, 0.0
  %v1075 = vmax.f32 %v1067, 0.0
  %v1076 = vld [vmem:[%s9] sm:$0xf]
  %v1077 = vld [vmem:[%s9 + $0x4] sm:$0xf]
  %v1078 = vld [vmem:[%s9 + $0x8] sm:$0xf]
  %v1079 = vld [vmem:[%s9 + $0xc] sm:$0xf]
  %v1080 = vld [vmem:[%s10] sm:$0xf]
  %v1081 = vld [vmem:[%s10 + $0x4] sm:$0xf]
  %v1082 = vld [vmem:[%s10 + $0x8] sm:$0xf]
  %v1083 = vld [vmem:[%s10 + $0xc] sm:$0xf]
  %1084 = vrot.lane.b32.xlu0 %v1068, 8
  %v1085 = vpop.permute.xlu0 %1084
  %1086 = vrot.lane.b32.xlu0 %v1070, 8
  %v1087 = vpop.permute.xlu0 %1086
  %1088 = vrot.lane.b32.xlu0 %v1072, 8
  %v1089 = vpop.permute.xlu0 %1088
  %1090 = vrot.lane.b32.xlu0 %v1074, 8
  %v1091 = vpop.permute.xlu0 %1090
  %vm1092 = vcmp.lt.s32.totalorder %v40, 8
  %v1093 = vsel %vm1092, 1, 0
  %vm1094 = vcmp.eq.s32.totalorder %v1093, 1
  %1096 = vset.pattern.permute.xlu0 0
  %1097 = vperm.xlu0 %1096, %v1068
  %v1098 = vpop.permute.xlu0 %1097
  %1101 = vset.pattern.permute.xlu0 0
  %1102 = vperm.xlu0 %1101, %v1070
  %v1103 = vpop.permute.xlu0 %1102
  %1106 = vset.pattern.permute.xlu0 0
  %1107 = vperm.xlu0 %1106, %v1072
  %v1108 = vpop.permute.xlu0 %1107
  %1111 = vset.pattern.permute.xlu0 0
  %1112 = vperm.xlu0 %1111, %v1074
  %v1113 = vpop.permute.xlu0 %1112
  %v1115 = vsel %vm1094, %v1098, %v1085
  %v1116 = vsel %vm1094, %v1103, %v1087
  %v1117 = vsel %vm1094, %v1108, %v1089
  %v1118 = vsel %vm1094, %v1113, %v1091
  %1119 = vrot.lane.b32.xlu0 %v1069, 8
  %v1120 = vpop.permute.xlu0 %1119
  %1121 = vrot.lane.b32.xlu0 %v1071, 8
  %v1122 = vpop.permute.xlu0 %1121
  %1123 = vrot.lane.b32.xlu0 %v1073, 8
  %v1124 = vpop.permute.xlu0 %1123
  %1125 = vrot.lane.b32.xlu0 %v1075, 8
  %v1126 = vpop.permute.xlu0 %1125
  %1128 = vset.pattern.permute.xlu0 0
  %1129 = vperm.xlu0 %1128, %v1069
  %v1130 = vpop.permute.xlu0 %1129
  %1133 = vset.pattern.permute.xlu0 0
  %1134 = vperm.xlu0 %1133, %v1071
  %v1135 = vpop.permute.xlu0 %1134
  %1138 = vset.pattern.permute.xlu0 0
  %1139 = vperm.xlu0 %1138, %v1073
  %v1140 = vpop.permute.xlu0 %1139
  %1143 = vset.pattern.permute.xlu0 0
  %1144 = vperm.xlu0 %1143, %v1075
  %v1145 = vpop.permute.xlu0 %1144
  %v1147 = vsel %vm1094, %v1130, %v1120
  %v1148 = vsel %vm1094, %v1135, %v1122
  %v1149 = vsel %vm1094, %v1140, %v1124
  %v1150 = vsel %vm1094, %v1145, %v1126
  %v1151 = vpack.c.bf16 %v1116, %v1115
  %v1152 = vpack.c.bf16 %v1148, %v1147
  %v1153 = vpack.c.bf16 %v1118, %v1117
  %v1154 = vpack.c.bf16 %v1150, %v1149
  %v1155 = vpack.c.bf16 %v1070, %v1068
  %v1156 = vpack.c.bf16 %v1071, %v1069
  %v1157 = vpack.c.bf16 %v1074, %v1072
  %v1158 = vpack.c.bf16 %v1075, %v1073
  %1159 = vset.pattern.permute.xlu0 7
  %1160 = vperm.xlu0 %1159, %v41
  %v1161 = vpop.permute.xlu0 %1160
  %1163 = vset.pattern.permute.xlu0 7
  %1164 = vperm.xlu0 %1163, %v42
  %v1165 = vpop.permute.xlu0 %1164
  %1167 = vset.pattern.permute.xlu0 7
  %1168 = vperm.xlu0 %1167, %v43
  %v1169 = vpop.permute.xlu0 %1168
  %1171 = vset.pattern.permute.xlu0 7
  %1172 = vperm.xlu0 %1171, %v44
  %v1173 = vpop.permute.xlu0 %1172
  %v1179 = vunpack.c.l.b16 %v1076
  %v1180 = vunpack.c.l.b16 %v1077
  %v1181 = vunpack.c.l.b16 %v1078
  %v1182 = vunpack.c.l.b16 %v1079
  %v1183 = vpack.c.b16 %v1180, %v1179
  %v1184 = vpack.c.b16 %v1182, %v1181
  %v1186 = vsel %vm282, %v1183, 0
  %v1189 = vsel %vm282, %v1184, 0
  %1191 = vmatpush.bf16.msra.mxu0 0
  %1192 = vmatpush.bf16.msra.mxu0 0
  %1193 = vmatpush.bf16.msra.mxu0 0
  %1194 = vmatpush.bf16.msra.mxu0 0
  %1195 = vmatpush.bf16.msra.mxu0 %v1157
  %1196 = vmatpush.bf16.msra.mxu0 %v1155
  %1197 = vmatpush.bf16.msra.mxu0 %v1153
  %1198 = vmatpush.bf16.msra.mxu0 %v1151
  %1199 = vmatmul.bf16.gmra.mxu0 %v1186
  %v1200 = vpop.f32.mrf.mxu0
  %v1201 = vadd.f32 %v1161, %v1200
  %v1202 = vpop.f32.mrf.mxu0
  %v1203 = vadd.f32 %v1165, %v1202
  %1204 = vmatmul.bf16.gmra.mxu0 %v1189
  %v1205 = vpop.f32.mrf.mxu0
  %v1206 = vadd.f32 %v1169, %v1205
  %v1207 = vpop.f32.mrf.mxu0
  %v1208 = vadd.f32 %v1173, %v1207
  %1209 = vdwg.mxu0
  %1210 = vmatpush.bf16.msra.mxu0 0
  %1211 = vmatpush.bf16.msra.mxu0 0
  %1212 = vmatpush.bf16.msra.mxu0 0
  %1213 = vmatpush.bf16.msra.mxu0 0
  %1214 = vmatpush.bf16.msra.mxu0 %v1158
  %1215 = vmatpush.bf16.msra.mxu0 %v1156
  %1216 = vmatpush.bf16.msra.mxu0 %v1154
  %1217 = vmatpush.bf16.msra.mxu0 %v1152
  %1218 = vmatmul.bf16.gmra.mxu0 %v1186
  %v1219 = vpop.f32.mrf.mxu0
  %v1220 = vadd.f32 %v1161, %v1219
  %v1221 = vpop.f32.mrf.mxu0
  %v1222 = vadd.f32 %v1165, %v1221
  %1223 = vmatmul.bf16.gmra.mxu0 %v1189
  %v1224 = vpop.f32.mrf.mxu0
  %v1225 = vadd.f32 %v1169, %v1224
  %v1226 = vpop.f32.mrf.mxu0
  %v1227 = vadd.f32 %v1173, %v1226
  %1228 = vdwg.mxu0
  %v1229 = vmax.f32 %v1201, 0.0
  %v1230 = vmax.f32 %v1220, 0.0
  %v1231 = vmax.f32 %v1203, 0.0
  %v1232 = vmax.f32 %v1222, 0.0
  %v1233 = vmax.f32 %v1206, 0.0
  %v1234 = vmax.f32 %v1225, 0.0
  %v1235 = vmax.f32 %v1208, 0.0
  %v1236 = vmax.f32 %v1227, 0.0
  %1237 = vrot.lane.b32.xlu0 %v1229, 8
  %v1238 = vpop.permute.xlu0 %1237
  %1239 = vrot.lane.b32.xlu0 %v1231, 8
  %v1240 = vpop.permute.xlu0 %1239
  %1241 = vrot.lane.b32.xlu0 %v1233, 8
  %v1242 = vpop.permute.xlu0 %1241
  %1243 = vrot.lane.b32.xlu0 %v1235, 8
  %v1244 = vpop.permute.xlu0 %1243
  %1246 = vset.pattern.permute.xlu0 0
  %1247 = vperm.xlu0 %1246, %v1229
  %v1248 = vpop.permute.xlu0 %1247
  %1251 = vset.pattern.permute.xlu0 0
  %1252 = vperm.xlu0 %1251, %v1231
  %v1253 = vpop.permute.xlu0 %1252
  %1256 = vset.pattern.permute.xlu0 0
  %1257 = vperm.xlu0 %1256, %v1233
  %v1258 = vpop.permute.xlu0 %1257
  %1261 = vset.pattern.permute.xlu0 0
  %1262 = vperm.xlu0 %1261, %v1235
  %v1263 = vpop.permute.xlu0 %1262
  %v1265 = vsel %vm1094, %v1248, %v1238
  %v1266 = vsel %vm1094, %v1253, %v1240
  %v1267 = vsel %vm1094, %v1258, %v1242
  %v1268 = vsel %vm1094, %v1263, %v1244
  %1269 = vrot.lane.b32.xlu0 %v1230, 8
  %v1270 = vpop.permute.xlu0 %1269
  %1271 = vrot.lane.b32.xlu0 %v1232, 8
  %v1272 = vpop.permute.xlu0 %1271
  %1273 = vrot.lane.b32.xlu0 %v1234, 8
  %v1274 = vpop.permute.xlu0 %1273
  %1275 = vrot.lane.b32.xlu0 %v1236, 8
  %v1276 = vpop.permute.xlu0 %1275
  %1278 = vset.pattern.permute.xlu0 0
  %1279 = vperm.xlu0 %1278, %v1230
  %v1280 = vpop.permute.xlu0 %1279
  %1283 = vset.pattern.permute.xlu0 0
  %1284 = vperm.xlu0 %1283, %v1232
  %v1285 = vpop.permute.xlu0 %1284
  %1288 = vset.pattern.permute.xlu0 0
  %1289 = vperm.xlu0 %1288, %v1234
  %v1290 = vpop.permute.xlu0 %1289
  %1293 = vset.pattern.permute.xlu0 0
  %1294 = vperm.xlu0 %1293, %v1236
  %v1295 = vpop.permute.xlu0 %1294
  %v1297 = vsel %vm1094, %v1280, %v1270
  %v1298 = vsel %vm1094, %v1285, %v1272
  %v1299 = vsel %vm1094, %v1290, %v1274
  %v1300 = vsel %vm1094, %v1295, %v1276
  %v1301 = vpack.c.bf16 %v1266, %v1265
  %v1302 = vpack.c.bf16 %v1298, %v1297
  %v1303 = vpack.c.bf16 %v1268, %v1267
  %v1304 = vpack.c.bf16 %v1300, %v1299
  %v1305 = vpack.c.bf16 %v1231, %v1229
  %v1306 = vpack.c.bf16 %v1232, %v1230
  %v1307 = vpack.c.bf16 %v1235, %v1233
  %v1308 = vpack.c.bf16 %v1236, %v1234
  %1309 = vset.pattern.permute.xlu0 8
  %1310 = vperm.xlu0 %1309, %v41
  %v1311 = vpop.permute.xlu0 %1310
  %1313 = vset.pattern.permute.xlu0 8
  %1314 = vperm.xlu0 %1313, %v42
  %v1315 = vpop.permute.xlu0 %1314
  %1317 = vset.pattern.permute.xlu0 8
  %1318 = vperm.xlu0 %1317, %v43
  %v1319 = vpop.permute.xlu0 %1318
  %1321 = vset.pattern.permute.xlu0 8
  %1322 = vperm.xlu0 %1321, %v44
  %v1323 = vpop.permute.xlu0 %1322
  %v1329 = vunpack.c.l.b16 %v1080
  %v1330 = vunpack.c.l.b16 %v1081
  %v1331 = vunpack.c.l.b16 %v1082
  %v1332 = vunpack.c.l.b16 %v1083
  %v1333 = vpack.c.b16 %v1330, %v1329
  %v1334 = vpack.c.b16 %v1332, %v1331
  %v1336 = vsel %vm282, %v1333, 0
  %v1339 = vsel %vm282, %v1334, 0
  %1341 = vmatpush.bf16.msra.mxu0 0
  %1342 = vmatpush.bf16.msra.mxu0 0
  %1343 = vmatpush.bf16.msra.mxu0 0
  %1344 = vmatpush.bf16.msra.mxu0 0
  %1345 = vmatpush.bf16.msra.mxu0 %v1307
  %1346 = vmatpush.bf16.msra.mxu0 %v1305
  %1347 = vmatpush.bf16.msra.mxu0 %v1303
  %1348 = vmatpush.bf16.msra.mxu0 %v1301
  %1349 = vmatmul.bf16.gmra.mxu0 %v1336
  %v1350 = vpop.f32.mrf.mxu0
  %v1351 = vadd.f32 %v1311, %v1350
  %v1352 = vpop.f32.mrf.mxu0
  %v1353 = vadd.f32 %v1315, %v1352
  %1354 = vmatmul.bf16.gmra.mxu0 %v1339
  %v1355 = vpop.f32.mrf.mxu0
  %v1356 = vadd.f32 %v1319, %v1355
  %v1357 = vpop.f32.mrf.mxu0
  %v1358 = vadd.f32 %v1323, %v1357
  %1359 = vdwg.mxu0
  %1360 = vmatpush.bf16.msra.mxu0 0
  %1361 = vmatpush.bf16.msra.mxu0 0
  %1362 = vmatpush.bf16.msra.mxu0 0
  %1363 = vmatpush.bf16.msra.mxu0 0
  %1364 = vmatpush.bf16.msra.mxu0 %v1308
  %1365 = vmatpush.bf16.msra.mxu0 %v1306
  %1366 = vmatpush.bf16.msra.mxu0 %v1304
  %1367 = vmatpush.bf16.msra.mxu0 %v1302
  %1368 = vmatmul.bf16.gmra.mxu0 %v1336
  %v1369 = vpop.f32.mrf.mxu0
  %v1370 = vadd.f32 %v1311, %v1369
  %v1371 = vpop.f32.mrf.mxu0
  %v1372 = vadd.f32 %v1315, %v1371
  %1373 = vmatmul.bf16.gmra.mxu0 %v1339
  %v1374 = vpop.f32.mrf.mxu0
  %v1375 = vadd.f32 %v1319, %v1374
  %v1376 = vpop.f32.mrf.mxu0
  %v1377 = vadd.f32 %v1323, %v1376
  %1378 = vdwg.mxu0
  %v1379 = vmax.f32 %v1351, 0.0
  %v1380 = vmax.f32 %v1370, 0.0
  %v1381 = vmax.f32 %v1353, 0.0
  %v1382 = vmax.f32 %v1372, 0.0
  %v1383 = vmax.f32 %v1356, 0.0
  %v1384 = vmax.f32 %v1375, 0.0
  %v1385 = vmax.f32 %v1358, 0.0
  %v1386 = vmax.f32 %v1377, 0.0
  %v1387 = vadd.f32 %v1379, %v1068
  %v1388 = vadd.f32 %v1380, %v1069
  %v1389 = vadd.f32 %v1381, %v1070
  %v1390 = vadd.f32 %v1382, %v1071
  %v1391 = vadd.f32 %v1383, %v1072
  %v1392 = vadd.f32 %v1384, %v1073
  %v1393 = vadd.f32 %v1385, %v1074
  %v1394 = vadd.f32 %v1386, %v1075
  %v1395 = vmax.f32 %v1387, 0.0
  %v1396 = vmax.f32 %v1388, 0.0
  %v1397 = vmax.f32 %v1389, 0.0
  %v1398 = vmax.f32 %v1390, 0.0
  %v1399 = vmax.f32 %v1391, 0.0
  %v1400 = vmax.f32 %v1392, 0.0
  %v1401 = vmax.f32 %v1393, 0.0
  %v1402 = vmax.f32 %v1394, 0.0
  %1403 = vst [vmem:[%s11] sm:$0xff] %v1395
  %1404 = vst [vmem:[%s11 + $0x8] sm:$0xff] %v1397
  %1405 = vst [vmem:[%s11 + $0x10] sm:$0xff] %v1399
  %1406 = vst [vmem:[%s11 + $0x18] sm:$0xff] %v1401
  %s1407 = scalar_lea.vmem %s11, 32
  %1408 = vst [vmem:[%s1407] sm:$0xff] %v1396
  %1409 = vst [vmem:[%s1407 + $0x8] sm:$0xff] %v1398
  %1410 = vst [vmem:[%s1407 + $0x10] sm:$0xff] %v1400
  %1411 = vst [vmem:[%s1407 + $0x18] sm:$0xff] %v1402
  // Predicated region
  $region46: #{_lambda_.1} parent=0 // pred_check
    _
  $region47: #{_lambda_.1} parent=0 // pred_check_branch
    %1413 = sbr.rel (0) target = $region49
  $region48: #{_lambda_.1} parent=0 // pred_region
    _
  $region49: #{_lambda_.1} parent=0 // pred_fallthru
    _
  // Predicated region
  $region50: #{_lambda_.1} parent=0 // pred_check
    _
  $region51: #{_lambda_.1} parent=0 // pred_check_branch
    %1415 = sbr.rel (0) target = $region53
  $region52: #{_lambda_.1} parent=0 // pred_region
    _
  $region53: #{_lambda_.1} parent=0 // pred_fallthru
    _

</llo_original>
